<compile_context>
chip_gen: v7x
topology: tpu7x:2x2x1
jax: 0.10.0
libtpu: 0.0.40
codegen_flags: <defaults>
</compile_context>

<pallas_src>
import numpy as np
import jax
import jax.numpy as jnp
from jax import lax
from jax.experimental import pallas as pl
from jax.experimental.pallas import tpu as pltpu

# ---------------- synthetic model config (small, deterministic) --------------
N_VERT = 128          # number of vertices  (real BFM: ~35709)
N_TRI = 192           # number of triangles (real BFM: ~70789)
B = 2                 # batch
CAMERA_DISTANCE = 10.0
FOCAL = 1015.0
IMAGE_SIZE = 224
CENTER = IMAGE_SIZE / 2.0

BASIS_TILE_M = 2048   # lane tile over 3N for the basis matmul (multiple of 128)
GEOM_TILE_N = 2048    # lane tile over N for geometry / SH kernels

# Spherical-harmonics constants (class SH in the reference)
_SH_A = [np.pi, 2 * np.pi / np.sqrt(3.0), 2 * np.pi / np.sqrt(8.0)]
_SH_C = [1 / np.sqrt(4 * np.pi), np.sqrt(3.0) / np.sqrt(4 * np.pi),
         3 * np.sqrt(5.0) / np.sqrt(12 * np.pi)]
A0C0 = float(_SH_A[0] * _SH_C[0])
A1C1 = float(_SH_A[1] * _SH_C[1])
A2C2 = float(_SH_A[2] * _SH_C[2])
SQRT3 = float(np.sqrt(3.0))


def _pick_tile(extent, preferred):
    # Full-extent blocks are always legal; otherwise use a multiple of 128 and
    # let pl.cdiv + Pallas masking handle the tail (no silent truncation).
    return extent if extent <= preferred else preferred


def _to_channel_major_t(base):
    """(3N, K) xyz-interleaved rows -> (K, 3N) columns ordered [all-x|all-y|all-z]."""
    m3, k = base.shape
    n = m3 // 3
    return jnp.transpose(base.reshape(n, 3, k), (2, 1, 0)).reshape(k, 3 * n)


def _mean_to_channel_major(mean_flat):
    """(3N,) xyz-interleaved -> (1, 3N) channel-major."""
    n = mean_flat.shape[0] // 3
    return jnp.transpose(mean_flat.reshape(n, 3), (1, 0)).reshape(1, 3 * n)


# ---------------- kernel 1: fused shape+texture basis combination ------------
def _fused_basis_kernel(sc_ref, sb_ref, smean_ref, tc_ref, tb_ref, tmean_ref,
                        shape_out_ref, tex_out_ref):
    shp = jnp.dot(sc_ref[...], sb_ref[...], preferred_element_type=jnp.float32)
    shape_out_ref[...] = shp + smean_ref[...]
    tex = jnp.dot(tc_ref[...], tb_ref[...], preferred_element_type=jnp.float32)
    tex_out_ref[...] = (tex + tmean_ref[...]) * (1.0 / 255.0)


def fused_basis_combine(shape_coeff, shape_basis_t, shape_mean,
                        tex_coeff, tex_basis_t, tex_mean,
                        tile_m=BASIS_TILE_M):
    """Returns (face_shape_flat (B,3N) f32, face_texture_flat (B,3N) f32)."""
    b, ks = shape_coeff.shape
    kt = tex_coeff.shape[1]
    m = shape_basis_t.shape[1]
    tm = _pick_tile(m, tile_m)
    grid = (pl.cdiv(m, tm),)

    flops = 2 * b * (ks + kt) * m
    bytes_accessed = ((ks + kt) * m * 2          # bf16 bases
                      + 2 * m * 4                # f32 means
                      + 2 * b * m * 4            # f32 outputs
                      + b * (ks + kt) * 2)       # bf16 coeffs
    cost = pl.CostEstimate(flops=int(flops), transcendentals=0,
                           bytes_accessed=int(bytes_accessed))

    return pl.pallas_call(
        _fused_basis_kernel,
        out_shape=(jax.ShapeDtypeStruct((b, m), jnp.float32),
                   jax.ShapeDtypeStruct((b, m), jnp.float32)),
        grid_spec=pltpu.PrefetchScalarGridSpec(
            num_scalar_prefetch=0,
            grid=grid,
            in_specs=[
                pl.BlockSpec((b, ks), lambda i: (0, 0)),
                pl.BlockSpec((ks, tm), lambda i: (0, i)),
                pl.BlockSpec((1, tm), lambda i: (0, i)),
                pl.BlockSpec((b, kt), lambda i: (0, 0)),
                pl.BlockSpec((kt, tm), lambda i: (0, i)),
                pl.BlockSpec((1, tm), lambda i: (0, i)),
            ],
            out_specs=(pl.BlockSpec((b, tm), lambda i: (0, i)),
                       pl.BlockSpec((b, tm), lambda i: (0, i))),
        ),
        compiler_params=pltpu.CompilerParams(
            dimension_semantics=("parallel",),
            vmem_limit_bytes=32 * 1024 * 1024),   # explicit: safe on v5e/v6e/v7x
        cost_estimate=cost,
    )(shape_coeff, shape_basis_t, shape_mean, tex_coeff, tex_basis_t, tex_mean)


# ---------------- kernel 2: rotate + translate + camera + projection ---------
def _geom_kernel(shape_ref, rot_ref, trans_ref,
                 rotated_ref, vertex_ref, proj_ref):
    bi = pl.program_id(0)
    fs = shape_ref[0]                          # (3, tile_n) channel-major
    x = fs[0:1, :]
    y = fs[1:2, :]
    z = fs[2:3, :]

    # 3x3 rotation and translation as SMEM scalars (VPU linear combinations,
    # no degenerate MXU matmul).  rot_flat[b, 3*k + c] = rot[b, k, c].
    r = [rot_ref[bi, k] for k in range(9)]
    t0 = trans_ref[bi, 0]
    t1 = trans_ref[bi, 1]
    t2 = trans_ref[bi, 2]

    # rotated[c] = sum_k fs[k] * rot[k, c]
    rx = x * r[0] + y * r[3] + z * r[6]
    ry = x * r[1] + y * r[4] + z * r[7]
    rz = x * r[2] + y * r[5] + z * r[8]
    rotated_ref[0, 0:1, :] = rx
    rotated_ref[0, 1:2, :] = ry
    rotated_ref[0, 2:3, :] = rz

    # translate + to_camera (z -> d - z)
    cx = rx + t0
    cy = ry + t1
    cz = CAMERA_DISTANCE - (rz + t2)
    vertex_ref[0, 0:1, :] = cx
    vertex_ref[0, 1:2, :] = cy
    vertex_ref[0, 2:3, :] = cz

    # perspective projection: proj = vertex @ persc_proj; xy = proj[:2]/proj[2]
    inv_z = 1.0 / cz                           # exact divide: sub-pixel accuracy
    proj_ref[0, 0:1, :] = FOCAL * cx * inv_z + CENTER
    proj_ref[0, 1:2, :] = FOCAL * cy * inv_z + CENTER


def geometry_transform(face_shape_cm, rot_flat, translation, tile_n=GEOM_TILE_N):
    b, _, n = face_shape_cm.shape
    tn = _pick_tile(n, tile_n)
    grid = (b, pl.cdiv(n, tn))
    cost = pl.CostEstimate(flops=int(30 * b * n), transcendentals=0,
                           bytes_accessed=int(4 * (3 + 3 + 3 + 2) * b * n))
    out_shapes = (
        jax.ShapeDtypeStruct((b, 3, n), jnp.float32),   # rotated (pre-translate)
        jax.ShapeDtypeStruct((b, 3, n), jnp.float32),   # camera-space vertex
        jax.ShapeDtypeStruct((b, 2, n), jnp.float32),   # image projection
    )
    return pl.pallas_call(
        _geom_kernel,
        out_shape=out_shapes,
        grid_spec=pltpu.PrefetchScalarGridSpec(
            num_scalar_prefetch=0,
            grid=grid,
            in_specs=[
                pl.BlockSpec((1, 3, tn), lambda bi, ni: (bi, 0, ni)),
                pl.BlockSpec(memory_space=pltpu.MemorySpace.SMEM),   # rot (B, 9)
                pl.BlockSpec(memory_space=pltpu.MemorySpace.SMEM),   # trans (B, 3)
            ],
            out_specs=(
                pl.BlockSpec((1, 3, tn), lambda bi, ni: (bi, 0, ni)),
                pl.BlockSpec((1, 3, tn), lambda bi, ni: (bi, 0, ni)),
                pl.BlockSpec((1, 2, tn), lambda bi, ni: (bi, 0, ni)),
            ),
        ),
        compiler_params=pltpu.CompilerParams(
            dimension_semantics=("parallel", "parallel")),
        cost_estimate=cost,
    )(face_shape_cm, rot_flat, translation)


# ---------------- kernel 3: SH lighting (normalize + 9-term combination) -----
def _color_kernel(tex_ref, vnorm_ref, gamma_ref, color_ref):
    bi = pl.program_id(0)
    vn = vnorm_ref[0]                          # (3, tile_n) unnormalized normals
    nxu = vn[0:1, :]
    nyu = vn[1:2, :]
    nzu = vn[2:3, :]
    sumsq = nxu * nxu + nyu * nyu + nzu * nzu
    inv = lax.rsqrt(jnp.maximum(sumsq, 1e-24))   # F.normalize(p=2, eps=1e-12)
    nx = nxu * inv
    ny = nyu * inv
    nz = nzu * inv

    # SH basis rows (Y0 is the constant A0C0, folded into the scalar term below)
    y1 = -A1C1 * ny
    y2 = A1C1 * nz
    y3 = -A1C1 * nx
    y4 = A2C2 * nx * ny
    y5 = -A2C2 * ny * nz
    y6 = (0.5 * A2C2 / SQRT3) * (3.0 * nz * nz - 1.0)
    y7 = -A2C2 * nx * nz
    y8 = 0.5 * A2C2 * (nx * nx - ny * ny)

    tex = tex_ref[0]                           # (3, tile_n)
    for c in range(3):
        g = [gamma_ref[bi, j * 3 + c] for j in range(9)]   # SMEM scalars
        rgb = (A0C0 * g[0]
               + y1 * g[1] + y2 * g[2] + y3 * g[3] + y4 * g[4]
               + y5 * g[5] + y6 * g[6] + y7 * g[7] + y8 * g[8])
        color_ref[0, c:c + 1, :] = rgb * tex[c:c + 1, :]


def sh_color(face_texture_cm, vertex_norm_cm, gamma_flat, tile_n=GEOM_TILE_N):
    b, _, n = face_texture_cm.shape
    tn = _pick_tile(n, tile_n)
    grid = (b, pl.cdiv(n, tn))
    cost = pl.CostEstimate(flops=int(70 * b * n), transcendentals=int(b * n),
                           bytes_accessed=int(4 * (3 + 3 + 3) * b * n))
    return pl.pallas_call(
        _color_kernel,
        out_shape=jax.ShapeDtypeStruct((b, 3, n), jnp.float32),
        grid_spec=pltpu.PrefetchScalarGridSpec(
            num_scalar_prefetch=0,
            grid=grid,
            in_specs=[
                pl.BlockSpec((1, 3, tn), lambda bi, ni: (bi, 0, ni)),
                pl.BlockSpec((1, 3, tn), lambda bi, ni: (bi, 0, ni)),
                pl.BlockSpec(memory_space=pltpu.MemorySpace.SMEM),   # gamma (B, 27)
            ],
            out_specs=pl.BlockSpec((1, 3, tn), lambda bi, ni: (bi, 0, ni)),
        ),
        compiler_params=pltpu.CompilerParams(
            dimension_semantics=("parallel", "parallel")),
        cost_estimate=cost,
    )(face_texture_cm, vertex_norm_cm, gamma_flat)


# ---------------- BFM module (JAX, synthetic deterministic params) -----------
class BFMPallas:
    def __init__(self, key):
        keys = jax.random.split(key, 5)
        m3 = 3 * N_VERT
        # synthetic analogues of the .mat buffers (no checkpoint load)
        id_base = jax.random.normal(keys[0], (m3, 80), jnp.float32) * 0.1
        ex_base = jax.random.normal(keys[1], (m3, 64), jnp.float32) * 0.1
        tex_base = jax.random.normal(keys[2], (m3, 80), jnp.float32)
        meanshape = jax.random.normal(keys[3], (N_VERT, 3), jnp.float32)
        meanshape = meanshape - jnp.mean(meanshape, axis=0, keepdims=True)  # recenter
        meantex = 128.0 + 32.0 * jax.random.normal(keys[4], (m3,), jnp.float32)

        # Pre-concatenate id+ex, pre-transpose, permute to channel-major columns,
        # and cast the (large, bandwidth-bound) bases to bf16 ONCE at init.
        shape_basis = jnp.concatenate([id_base, ex_base], axis=1)        # (3N, 144)
        self.shape_basis_t = _to_channel_major_t(shape_basis).astype(jnp.bfloat16)
        self.tex_basis_t = _to_channel_major_t(tex_base).astype(jnp.bfloat16)
        self.meanshape_cm = jnp.transpose(meanshape, (1, 0)).reshape(1, m3)  # f32
        self.meantex_cm = _mean_to_channel_major(meantex)                    # f32

        # deterministic synthetic topology
        idx = np.arange(N_TRI)
        tri = np.stack([idx % N_VERT, (idx + 1) % N_VERT, (idx + 7) % N_VERT],
                       axis=1).astype(np.int32)
        self.face_buf = jnp.asarray(tri)
        lists = [[] for _ in range(N_VERT)]
        for f_idx in range(N_TRI):
            for v in tri[f_idx]:
                lists[int(v)].append(f_idx)
        k_max = max(len(l) for l in lists)
        point_buf = np.full((N_VERT, k_max), N_TRI, dtype=np.int32)  # pad -> zero row
        for v, l in enumerate(lists):
            point_buf[v, :len(l)] = l
        self.point_buf = jnp.asarray(point_buf)
        self.keypoints = jnp.arange(68, dtype=jnp.int32)
        self.init_lit = jnp.asarray(
            np.array([0.8, 0, 0, 0, 0, 0, 0, 0, 0], np.float32).reshape(1, 1, 9))

    # rot = (Rz @ Ry @ Rx)^T   -- tiny per-batch 3x3 math, plain JAX glue
    def compute_rotation(self, angles):
        x, y, z = angles[:, 0], angles[:, 1], angles[:, 2]
        cx, sx = jnp.cos(x), jnp.sin(x)
        cy, sy = jnp.cos(y), jnp.sin(y)
        cz, sz = jnp.cos(z), jnp.sin(z)
        ones = jnp.ones_like(x)
        zeros = jnp.zeros_like(x)
        rot_x = jnp.stack([ones, zeros, zeros,
                           zeros, cx, -sx,
                           zeros, sx, cx], axis=1).reshape(-1, 3, 3)
        rot_y = jnp.stack([cy, zeros, sy,
                           zeros, ones, zeros,
                           -sy, zeros, cy], axis=1).reshape(-1, 3, 3)
        rot_z = jnp.stack([cz, -sz, zeros,
                           sz, cz, zeros,
                           zeros, zeros, ones], axis=1).reshape(-1, 3, 3)
        rot = rot_z @ rot_y @ rot_x
        return jnp.transpose(rot, (0, 2, 1))

    # Topology gathers stay in plain JAX (channel-major layout); the final
    # per-vertex L2 normalization is fused into the Pallas SH-color kernel.
    def compute_norm_unnormalized_cm(self, rotated_cm):
        v1 = jnp.take(rotated_cm, self.face_buf[:, 0], axis=2)   # (B, 3, T)
        v2 = jnp.take(rotated_cm, self.face_buf[:, 1], axis=2)
        v3 = jnp.take(rotated_cm, self.face_buf[:, 2], axis=2)
        e1 = v1 - v2
        e2 = v2 - v3
        face_norm = jnp.cross(e1, e2, axis=1)                    # (B, 3, T)
        nrm = jnp.linalg.norm(face_norm, axis=1, keepdims=True)
        face_norm = face_norm / jnp.maximum(nrm, 1e-12)
        face_norm = jnp.concatenate(
            [face_norm, jnp.zeros((rotated_cm.shape[0], 3, 1), jnp.float32)], axis=2)
        vertex_norm = jnp.sum(jnp.take(face_norm, self.point_buf, axis=2), axis=3)
        return vertex_norm                                        # (B, 3, N)

    def forward(self, coeffs):
        b = coeffs.shape[0]
        shape_coeff = coeffs[:, 0:144].astype(jnp.bfloat16)   # id (80) + exp (64)
        tex_coeff = coeffs[:, 144:224].astype(jnp.bfloat16)
        angles = coeffs[:, 224:227]
        gamma = coeffs[:, 227:254]
        translation = coeffs[:, 254:257]

        # -- shape / texture models (single fused Pallas matmul kernel) --
        face_shape_flat, face_tex_flat = fused_basis_combine(
            shape_coeff, self.shape_basis_t, self.meanshape_cm,
            tex_coeff, self.tex_basis_t, self.meantex_cm)
        face_shape_cm = face_shape_flat.reshape(b, 3, N_VERT)
        face_texture_cm = face_tex_flat.reshape(b, 3, N_VERT)

        # -- geometry (Pallas kernel, channel-major) --
        rotation = self.compute_rotation(angles)              # (B, 3, 3)
        rot_flat = rotation.reshape(b, 9)
        rotated_cm, vertex_cm, proj_cm = geometry_transform(
            face_shape_cm, rot_flat, translation)

        # -- landmarks (gather + y flip, JAX glue) --
        lm = proj_cm[:, :, self.keypoints]                     # (B, 2, 68)
        lm = lm.at[:, 1, :].set(IMAGE_SIZE - 1.0 - lm[:, 1, :])
        landmark68 = jnp.transpose(lm, (0, 2, 1))              # (B, 68, 2)

        # -- normals + SH color (gathers in JAX, lighting in Pallas) --
        vertex_norm_cm = self.compute_norm_unnormalized_cm(rotated_cm)
        gamma_sh = gamma.reshape(b, 3, 9) + self.init_lit
        gamma_flat = jnp.transpose(gamma_sh, (0, 2, 1)).reshape(b, 27)  # [j*3 + c]
        face_color_cm = sh_color(face_texture_cm, vertex_norm_cm, gamma_flat)

        # present results in the reference (B, N, 3) layout
        face_shape = jnp.transpose(face_shape_cm, (0, 2, 1))
        face_vertex = jnp.transpose(vertex_cm, (0, 2, 1))
        face_color = jnp.transpose(face_color_cm, (0, 2, 1))
        face_texture = jnp.transpose(face_texture_cm, (0, 2, 1))
        return face_shape, face_vertex, face_color, face_texture, landmark68


if __name__ == "__main__":
    key = jax.random.PRNGKey(0)
    k_model, k_coeff = jax.random.split(key)
    model = BFMPallas(k_model)
    coeffs = jax.random.normal(k_coeff, (B, 257), jnp.float32) * 0.1

    face_shape, face_vertex, face_color, face_texture, landmark68 = (
        jax.jit(model.forward)(coeffs))
    jax.block_until_ready((face_shape, face_vertex, face_color,
                           face_texture, landmark68))

    assert face_shape.shape == (B, N_VERT, 3)
    assert face_vertex.shape == (B, N_VERT, 3)
    assert face_color.shape == (B, N_VERT, 3)
    assert face_texture.shape == (B, N_VERT, 3)
    assert landmark68.shape == (B, 68, 2)
    assert bool(jnp.all(jnp.isfinite(face_color)))
    print("KERNEL_OK")
</pallas_src>

<mosaic_0001>
module attributes {stable_mosaic.version = 11 : i64} {
  func.func @_geom_kernel(%arg0: i32, %arg1: i32, %arg2: memref<1x3x128xf32, #tpu.memory_space<vmem>>, %arg3: memref<2x9xf32, #tpu.memory_space<smem>>, %arg4: memref<2x3xf32, #tpu.memory_space<smem>>, %arg5: memref<1x3x128xf32, #tpu.memory_space<vmem>>, %arg6: memref<1x3x128xf32, #tpu.memory_space<vmem>>, %arg7: memref<1x2x128xf32, #tpu.memory_space<vmem>>) attributes {dimension_semantics = [#tpu.dimension_semantics<parallel>, #tpu.dimension_semantics<parallel>], iteration_bounds = array<i64: 2, 1>, scalar_prefetch = 0 : i64, scratch_operands = 0 : i64, tpu.core_type = #tpu.core_type<tc>, window_params = [{transform_indices = @transform_0, window_bounds = array<i64: 1, 3, 128>}, {transform_indices = @transform_1, window_bounds = array<i64: 2, 9>}, {transform_indices = @transform_2, window_bounds = array<i64: 2, 3>}, {transform_indices = @transform_3, window_bounds = array<i64: 1, 3, 128>}, {transform_indices = @transform_4, window_bounds = array<i64: 1, 3, 128>}, {transform_indices = @transform_5, window_bounds = array<i64: 1, 2, 128>}]} {
    %c0 = arith.constant 0 : index
    %c0_0 = arith.constant 0 : index
    %c0_1 = arith.constant 0 : index
    %0 = vector.load %arg2[%c0, %c0_0, %c0_1] : memref<1x3x128xf32, #tpu.memory_space<vmem>>, vector<1x3x128xf32>
    %1 = vector.shape_cast %0 : vector<1x3x128xf32> to vector<3x128xf32>
    %2 = vector.extract_strided_slice %1 {offsets = [0, 0], sizes = [1, 128], strides = [1, 1]} : vector<3x128xf32> to vector<1x128xf32>
    %3 = vector.extract_strided_slice %1 {offsets = [1, 0], sizes = [1, 128], strides = [1, 1]} : vector<3x128xf32> to vector<1x128xf32>
    %4 = vector.extract_strided_slice %1 {offsets = [2, 0], sizes = [1, 128], strides = [1, 1]} : vector<3x128xf32> to vector<1x128xf32>
    %5 = arith.index_cast %arg0 : i32 to index
    %c0_2 = arith.constant 0 : index
    %6 = memref.load %arg3[%5, %c0_2] : memref<2x9xf32, #tpu.memory_space<smem>>
    %7 = arith.index_cast %arg0 : i32 to index
    %c1 = arith.constant 1 : index
    %8 = memref.load %arg3[%7, %c1] : memref<2x9xf32, #tpu.memory_space<smem>>
    %9 = arith.index_cast %arg0 : i32 to index
    %c2 = arith.constant 2 : index
    %10 = memref.load %arg3[%9, %c2] : memref<2x9xf32, #tpu.memory_space<smem>>
    %11 = arith.index_cast %arg0 : i32 to index
    %c3 = arith.constant 3 : index
    %12 = memref.load %arg3[%11, %c3] : memref<2x9xf32, #tpu.memory_space<smem>>
    %13 = arith.index_cast %arg0 : i32 to index
    %c4 = arith.constant 4 : index
    %14 = memref.load %arg3[%13, %c4] : memref<2x9xf32, #tpu.memory_space<smem>>
    %15 = arith.index_cast %arg0 : i32 to index
    %c5 = arith.constant 5 : index
    %16 = memref.load %arg3[%15, %c5] : memref<2x9xf32, #tpu.memory_space<smem>>
    %17 = arith.index_cast %arg0 : i32 to index
    %c6 = arith.constant 6 : index
    %18 = memref.load %arg3[%17, %c6] : memref<2x9xf32, #tpu.memory_space<smem>>
    %19 = arith.index_cast %arg0 : i32 to index
    %c7 = arith.constant 7 : index
    %20 = memref.load %arg3[%19, %c7] : memref<2x9xf32, #tpu.memory_space<smem>>
    %21 = arith.index_cast %arg0 : i32 to index
    %c8 = arith.constant 8 : index
    %22 = memref.load %arg3[%21, %c8] : memref<2x9xf32, #tpu.memory_space<smem>>
    %23 = arith.index_cast %arg0 : i32 to index
    %c0_3 = arith.constant 0 : index
    %24 = memref.load %arg4[%23, %c0_3] : memref<2x3xf32, #tpu.memory_space<smem>>
    %25 = arith.index_cast %arg0 : i32 to index
    %c1_4 = arith.constant 1 : index
    %26 = memref.load %arg4[%25, %c1_4] : memref<2x3xf32, #tpu.memory_space<smem>>
    %27 = arith.index_cast %arg0 : i32 to index
    %c2_5 = arith.constant 2 : index
    %28 = memref.load %arg4[%27, %c2_5] : memref<2x3xf32, #tpu.memory_space<smem>>
    %29 = vector.broadcast %6 : f32 to vector<1x128xf32>
    %30 = arith.mulf %2, %29 : vector<1x128xf32>
    %31 = vector.broadcast %12 : f32 to vector<1x128xf32>
    %32 = arith.mulf %3, %31 : vector<1x128xf32>
    %33 = arith.addf %30, %32 : vector<1x128xf32>
    %34 = vector.broadcast %18 : f32 to vector<1x128xf32>
    %35 = arith.mulf %4, %34 : vector<1x128xf32>
    %36 = arith.addf %33, %35 : vector<1x128xf32>
    %37 = vector.broadcast %8 : f32 to vector<1x128xf32>
    %38 = arith.mulf %2, %37 : vector<1x128xf32>
    %39 = vector.broadcast %14 : f32 to vector<1x128xf32>
    %40 = arith.mulf %3, %39 : vector<1x128xf32>
    %41 = arith.addf %38, %40 : vector<1x128xf32>
    %42 = vector.broadcast %20 : f32 to vector<1x128xf32>
    %43 = arith.mulf %4, %42 : vector<1x128xf32>
    %44 = arith.addf %41, %43 : vector<1x128xf32>
    %45 = vector.broadcast %10 : f32 to vector<1x128xf32>
    %46 = arith.mulf %2, %45 : vector<1x128xf32>
    %47 = vector.broadcast %16 : f32 to vector<1x128xf32>
    %48 = arith.mulf %3, %47 : vector<1x128xf32>
    %49 = arith.addf %46, %48 : vector<1x128xf32>
    %50 = vector.broadcast %22 : f32 to vector<1x128xf32>
    %51 = arith.mulf %4, %50 : vector<1x128xf32>
    %52 = arith.addf %49, %51 : vector<1x128xf32>
    %c0_6 = arith.constant 0 : index
    %c0_7 = arith.constant 0 : index
    %c0_8 = arith.constant 0 : index
    %53 = vector.load %arg5[%c0_6, %c0_7, %c0_8] : memref<1x3x128xf32, #tpu.memory_space<vmem>>, vector<1x1x128xf32>
    %54 = vector.shape_cast %53 : vector<1x1x128xf32> to vector<1x128xf32>
    %55 = vector.shape_cast %36 : vector<1x128xf32> to vector<1x1x128xf32>
    tpu.vector_store %arg5[%c0_6, %c0_7, %c0_8], %55 {strides = array<i32>} : memref<1x3x128xf32, #tpu.memory_space<vmem>>, vector<1x1x128xf32>,
    %c0_9 = arith.constant 0 : index
    %c1_10 = arith.constant 1 : index
    %c0_11 = arith.constant 0 : index
    %56 = vector.load %arg5[%c0_9, %c1_10, %c0_11] : memref<1x3x128xf32, #tpu.memory_space<vmem>>, vector<1x1x128xf32>
    %57 = vector.shape_cast %56 : vector<1x1x128xf32> to vector<1x128xf32>
    %58 = vector.shape_cast %44 : vector<1x128xf32> to vector<1x1x128xf32>
    tpu.vector_store %arg5[%c0_9, %c1_10, %c0_11], %58 {strides = array<i32>} : memref<1x3x128xf32, #tpu.memory_space<vmem>>, vector<1x1x128xf32>,
    %c0_12 = arith.constant 0 : index
    %c2_13 = arith.constant 2 : index
    %c0_14 = arith.constant 0 : index
    %59 = vector.load %arg5[%c0_12, %c2_13, %c0_14] : memref<1x3x128xf32, #tpu.memory_space<vmem>>, vector<1x1x128xf32>
    %60 = vector.shape_cast %59 : vector<1x1x128xf32> to vector<1x128xf32>
    %61 = vector.shape_cast %52 : vector<1x128xf32> to vector<1x1x128xf32>
    tpu.vector_store %arg5[%c0_12, %c2_13, %c0_14], %61 {strides = array<i32>} : memref<1x3x128xf32, #tpu.memory_space<vmem>>, vector<1x1x128xf32>,
    %62 = vector.broadcast %24 : f32 to vector<1x128xf32>
    %63 = arith.addf %36, %62 : vector<1x128xf32>
    %64 = vector.broadcast %26 : f32 to vector<1x128xf32>
    %65 = arith.addf %44, %64 : vector<1x128xf32>
    %66 = vector.broadcast %28 : f32 to vector<1x128xf32>
    %67 = arith.addf %52, %66 : vector<1x128xf32>
    %cst = arith.constant 1.000000e+01 : f32
    %68 = vector.broadcast %cst : f32 to vector<1x128xf32>
    %69 = arith.subf %68, %67 : vector<1x128xf32>
    %c0_15 = arith.constant 0 : index
    %c0_16 = arith.constant 0 : index
    %c0_17 = arith.constant 0 : index
    %70 = vector.load %arg6[%c0_15, %c0_16, %c0_17] : memref<1x3x128xf32, #tpu.memory_space<vmem>>, vector<1x1x128xf32>
    %71 = vector.shape_cast %70 : vector<1x1x128xf32> to vector<1x128xf32>
    %72 = vector.shape_cast %63 : vector<1x128xf32> to vector<1x1x128xf32>
    tpu.vector_store %arg6[%c0_15, %c0_16, %c0_17], %72 {strides = array<i32>} : memref<1x3x128xf32, #tpu.memory_space<vmem>>, vector<1x1x128xf32>,
    %c0_18 = arith.constant 0 : index
    %c1_19 = arith.constant 1 : index
    %c0_20 = arith.constant 0 : index
    %73 = vector.load %arg6[%c0_18, %c1_19, %c0_20] : memref<1x3x128xf32, #tpu.memory_space<vmem>>, vector<1x1x128xf32>
    %74 = vector.shape_cast %73 : vector<1x1x128xf32> to vector<1x128xf32>
    %75 = vector.shape_cast %65 : vector<1x128xf32> to vector<1x1x128xf32>
    tpu.vector_store %arg6[%c0_18, %c1_19, %c0_20], %75 {strides = array<i32>} : memref<1x3x128xf32, #tpu.memory_space<vmem>>, vector<1x1x128xf32>,
    %c0_21 = arith.constant 0 : index
    %c2_22 = arith.constant 2 : index
    %c0_23 = arith.constant 0 : index
    %76 = vector.load %arg6[%c0_21, %c2_22, %c0_23] : memref<1x3x128xf32, #tpu.memory_space<vmem>>, vector<1x1x128xf32>
    %77 = vector.shape_cast %76 : vector<1x1x128xf32> to vector<1x128xf32>
    %78 = vector.shape_cast %69 : vector<1x128xf32> to vector<1x1x128xf32>
    tpu.vector_store %arg6[%c0_21, %c2_22, %c0_23], %78 {strides = array<i32>} : memref<1x3x128xf32, #tpu.memory_space<vmem>>, vector<1x1x128xf32>,
    %cst_24 = arith.constant 1.000000e+00 : f32
    %79 = vector.broadcast %cst_24 : f32 to vector<1x128xf32>
    %80 = arith.divf %79, %69 : vector<1x128xf32>
    %cst_25 = arith.constant 1.015000e+03 : f32
    %81 = vector.broadcast %cst_25 : f32 to vector<1x128xf32>
    %82 = arith.mulf %81, %63 : vector<1x128xf32>
    %83 = arith.mulf %82, %80 : vector<1x128xf32>
    %cst_26 = arith.constant 1.120000e+02 : f32
    %84 = vector.broadcast %cst_26 : f32 to vector<1x128xf32>
    %85 = arith.addf %83, %84 : vector<1x128xf32>
    %c0_27 = arith.constant 0 : index
    %c0_28 = arith.constant 0 : index
    %c0_29 = arith.constant 0 : index
    %86 = vector.load %arg7[%c0_27, %c0_28, %c0_29] : memref<1x2x128xf32, #tpu.memory_space<vmem>>, vector<1x1x128xf32>
    %87 = vector.shape_cast %86 : vector<1x1x128xf32> to vector<1x128xf32>
    %88 = vector.shape_cast %85 : vector<1x128xf32> to vector<1x1x128xf32>
    tpu.vector_store %arg7[%c0_27, %c0_28, %c0_29], %88 {strides = array<i32>} : memref<1x2x128xf32, #tpu.memory_space<vmem>>, vector<1x1x128xf32>,
    %cst_30 = arith.constant 1.015000e+03 : f32
    %89 = vector.broadcast %cst_30 : f32 to vector<1x128xf32>
    %90 = arith.mulf %89, %65 : vector<1x128xf32>
    %91 = arith.mulf %90, %80 : vector<1x128xf32>
    %cst_31 = arith.constant 1.120000e+02 : f32
    %92 = vector.broadcast %cst_31 : f32 to vector<1x128xf32>
    %93 = arith.addf %91, %92 : vector<1x128xf32>
    %c0_32 = arith.constant 0 : index
    %c1_33 = arith.constant 1 : index
    %c0_34 = arith.constant 0 : index
    %94 = vector.load %arg7[%c0_32, %c1_33, %c0_34] : memref<1x2x128xf32, #tpu.memory_space<vmem>>, vector<1x1x128xf32>
    %95 = vector.shape_cast %94 : vector<1x1x128xf32> to vector<1x128xf32>
    %96 = vector.shape_cast %93 : vector<1x128xf32> to vector<1x1x128xf32>
    tpu.vector_store %arg7[%c0_32, %c1_33, %c0_34], %96 {strides = array<i32>} : memref<1x2x128xf32, #tpu.memory_space<vmem>>, vector<1x1x128xf32>,
    return
  }
  func.func @transform_0(%arg0: i32, %arg1: i32) -> (i32, i32, i32) {
    %c0_i32 = arith.constant 0 : i32
    %c0_i32_0 = arith.constant 0 : i32
    return %arg0, %c0_i32, %arg1 : i32, i32, i32
  }
  func.func @transform_1(%arg0: i32, %arg1: i32) -> (i32, i32) {
    %c0_i32 = arith.constant 0 : i32
    %c0_i32_0 = arith.constant 0 : i32
    %c0_i32_1 = arith.constant 0 : i32
    return %c0_i32, %c0_i32_0 : i32, i32
  }
  func.func @transform_2(%arg0: i32, %arg1: i32) -> (i32, i32) {
    %c0_i32 = arith.constant 0 : i32
    %c0_i32_0 = arith.constant 0 : i32
    %c0_i32_1 = arith.constant 0 : i32
    return %c0_i32, %c0_i32_0 : i32, i32
  }
  func.func @transform_3(%arg0: i32, %arg1: i32) -> (i32, i32, i32) {
    %c0_i32 = arith.constant 0 : i32
    %c0_i32_0 = arith.constant 0 : i32
    return %arg0, %c0_i32, %arg1 : i32, i32, i32
  }
  func.func @transform_4(%arg0: i32, %arg1: i32) -> (i32, i32, i32) {
    %c0_i32 = arith.constant 0 : i32
    %c0_i32_0 = arith.constant 0 : i32
    return %arg0, %c0_i32, %arg1 : i32, i32, i32
  }
  func.func @transform_5(%arg0: i32, %arg1: i32) -> (i32, i32, i32) {
    %c0_i32 = arith.constant 0 : i32
    %c0_i32_0 = arith.constant 0 : i32
    return %arg0, %c0_i32, %arg1 : i32, i32, i32
  }
}

module attributes {stable_mosaic.version = 11 : i64} {
  func.func @_fused_basis_kernel(%arg0: i32, %arg1: memref<2x144xbf16, #tpu.memory_space<vmem>>, %arg2: memref<144x384xbf16, #tpu.memory_space<vmem>>, %arg3: memref<1x384xf32, #tpu.memory_space<vmem>>, %arg4: memref<2x80xbf16, #tpu.memory_space<vmem>>, %arg5: memref<80x384xbf16, #tpu.memory_space<vmem>>, %arg6: memref<1x384xf32, #tpu.memory_space<vmem>>, %arg7: memref<2x384xf32, #tpu.memory_space<vmem>>, %arg8: memref<2x384xf32, #tpu.memory_space<vmem>>) attributes {dimension_semantics = [#tpu.dimension_semantics<parallel>], iteration_bounds = array<i64: 1>, scalar_prefetch = 0 : i64, scratch_operands = 0 : i64, tpu.core_type = #tpu.core_type<tc>, window_params = [{pipeline_mode = #tpu.pipeline_mode<synchronous>, transform_indices = @transform_0, window_bounds = array<i64: 2, 144>}, {transform_indices = @transform_1, window_bounds = array<i64: 144, 384>}, {transform_indices = @transform_2, window_bounds = array<i64: 1, 384>}, {pipeline_mode = #tpu.pipeline_mode<synchronous>, transform_indices = @transform_3, window_bounds = array<i64: 2, 80>}, {transform_indices = @transform_4, window_bounds = array<i64: 80, 384>}, {transform_indices = @transform_5, window_bounds = array<i64: 1, 384>}, {transform_indices = @transform_6, window_bounds = array<i64: 2, 384>}, {transform_indices = @transform_7, window_bounds = array<i64: 2, 384>}]} {
    %c0 = arith.constant 0 : index
    %c0_0 = arith.constant 0 : index
    %0 = vector.load %arg1[%c0, %c0_0] : memref<2x144xbf16, #tpu.memory_space<vmem>>, vector<2x144xbf16>
    %c0_1 = arith.constant 0 : index
    %c0_2 = arith.constant 0 : index
    %1 = vector.load %arg2[%c0_1, %c0_2] : memref<144x384xbf16, #tpu.memory_space<vmem>>, vector<144x384xbf16>
    %cst = arith.constant dense<0.000000e+00> : vector<2x384xf32>
    %2 = tpu.matmul %0, %1, %cst {dimension_numbers = #tpu.dot_dimension_numbers<[1], [0], [0], [1], [0, 0, 1, 1], [], []>} : vector<2x144xbf16>, vector<144x384xbf16>, vector<2x384xf32> -> vector<2x384xf32>
    %c0_3 = arith.constant 0 : index
    %c0_4 = arith.constant 0 : index
    %3 = vector.load %arg3[%c0_3, %c0_4] : memref<1x384xf32, #tpu.memory_space<vmem>>, vector<1x384xf32>
    %4 = vector.broadcast %3 : vector<1x384xf32> to vector<2x384xf32>
    %5 = arith.addf %2, %4 : vector<2x384xf32>
    %c0_5 = arith.constant 0 : index
    %c0_6 = arith.constant 0 : index
    %6 = vector.load %arg7[%c0_5, %c0_6] : memref<2x384xf32, #tpu.memory_space<vmem>>, vector<2x384xf32>
    tpu.vector_store %arg7[%c0_5, %c0_6], %5 {strides = array<i32>} : memref<2x384xf32, #tpu.memory_space<vmem>>, vector<2x384xf32>,
    %c0_7 = arith.constant 0 : index
    %c0_8 = arith.constant 0 : index
    %7 = vector.load %arg4[%c0_7, %c0_8] : memref<2x80xbf16, #tpu.memory_space<vmem>>, vector<2x80xbf16>
    %c0_9 = arith.constant 0 : index
    %c0_10 = arith.constant 0 : index
    %8 = vector.load %arg5[%c0_9, %c0_10] : memref<80x384xbf16, #tpu.memory_space<vmem>>, vector<80x384xbf16>
    %cst_11 = arith.constant dense<0.000000e+00> : vector<2x384xf32>
    %9 = tpu.matmul %7, %8, %cst_11 {dimension_numbers = #tpu.dot_dimension_numbers<[1], [0], [0], [1], [0, 0, 1, 1], [], []>} : vector<2x80xbf16>, vector<80x384xbf16>, vector<2x384xf32> -> vector<2x384xf32>
    %c0_12 = arith.constant 0 : index
    %c0_13 = arith.constant 0 : index
    %10 = vector.load %arg6[%c0_12, %c0_13] : memref<1x384xf32, #tpu.memory_space<vmem>>, vector<1x384xf32>
    %11 = vector.broadcast %10 : vector<1x384xf32> to vector<2x384xf32>
    %12 = arith.addf %9, %11 : vector<2x384xf32>
    %cst_14 = arith.constant 0.00392156886 : f32
    %13 = vector.broadcast %cst_14 : f32 to vector<2x384xf32>
    %14 = arith.mulf %12, %13 : vector<2x384xf32>
    %c0_15 = arith.constant 0 : index
    %c0_16 = arith.constant 0 : index
    %15 = vector.load %arg8[%c0_15, %c0_16] : memref<2x384xf32, #tpu.memory_space<vmem>>, vector<2x384xf32>
    tpu.vector_store %arg8[%c0_15, %c0_16], %14 {strides = array<i32>} : memref<2x384xf32, #tpu.memory_space<vmem>>, vector<2x384xf32>,
    return
  }
  func.func @transform_0(%arg0: i32) -> (i32, i32) {
    %c0_i32 = arith.constant 0 : i32
    %c0_i32_0 = arith.constant 0 : i32
    %c0_i32_1 = arith.constant 0 : i32
    return %c0_i32, %c0_i32_0 : i32, i32
  }
  func.func @transform_1(%arg0: i32) -> (i32, i32) {
    %c0_i32 = arith.constant 0 : i32
    %c0_i32_0 = arith.constant 0 : i32
    return %c0_i32, %arg0 : i32, i32
  }
  func.func @transform_2(%arg0: i32) -> (i32, i32) {
    %c0_i32 = arith.constant 0 : i32
    %c0_i32_0 = arith.constant 0 : i32
    return %c0_i32, %arg0 : i32, i32
  }
  func.func @transform_3(%arg0: i32) -> (i32, i32) {
    %c0_i32 = arith.constant 0 : i32
    %c0_i32_0 = arith.constant 0 : i32
    %c0_i32_1 = arith.constant 0 : i32
    return %c0_i32, %c0_i32_0 : i32, i32
  }
  func.func @transform_4(%arg0: i32) -> (i32, i32) {
    %c0_i32 = arith.constant 0 : i32
    %c0_i32_0 = arith.constant 0 : i32
    return %c0_i32, %arg0 : i32, i32
  }
  func.func @transform_5(%arg0: i32) -> (i32, i32) {
    %c0_i32 = arith.constant 0 : i32
    %c0_i32_0 = arith.constant 0 : i32
    return %c0_i32, %arg0 : i32, i32
  }
  func.func @transform_6(%arg0: i32) -> (i32, i32) {
    %c0_i32 = arith.constant 0 : i32
    %c0_i32_0 = arith.constant 0 : i32
    return %c0_i32, %arg0 : i32, i32
  }
  func.func @transform_7(%arg0: i32) -> (i32, i32) {
    %c0_i32 = arith.constant 0 : i32
    %c0_i32_0 = arith.constant 0 : i32
    return %c0_i32, %arg0 : i32, i32
  }
}

module attributes {stable_mosaic.version = 11 : i64} {
  func.func @_color_kernel(%arg0: i32, %arg1: i32, %arg2: memref<1x3x128xf32, #tpu.memory_space<vmem>>, %arg3: memref<1x3x128xf32, #tpu.memory_space<vmem>>, %arg4: memref<2x27xf32, #tpu.memory_space<smem>>, %arg5: memref<1x3x128xf32, #tpu.memory_space<vmem>>) attributes {dimension_semantics = [#tpu.dimension_semantics<parallel>, #tpu.dimension_semantics<parallel>], iteration_bounds = array<i64: 2, 1>, scalar_prefetch = 0 : i64, scratch_operands = 0 : i64, tpu.core_type = #tpu.core_type<tc>, window_params = [{transform_indices = @transform_0, window_bounds = array<i64: 1, 3, 128>}, {transform_indices = @transform_1, window_bounds = array<i64: 1, 3, 128>}, {transform_indices = @transform_2, window_bounds = array<i64: 2, 27>}, {transform_indices = @transform_3, window_bounds = array<i64: 1, 3, 128>}]} {
    %c0 = arith.constant 0 : index
    %c0_0 = arith.constant 0 : index
    %c0_1 = arith.constant 0 : index
    %0 = vector.load %arg3[%c0, %c0_0, %c0_1] : memref<1x3x128xf32, #tpu.memory_space<vmem>>, vector<1x3x128xf32>
    %1 = vector.shape_cast %0 : vector<1x3x128xf32> to vector<3x128xf32>
    %2 = vector.extract_strided_slice %1 {offsets = [0, 0], sizes = [1, 128], strides = [1, 1]} : vector<3x128xf32> to vector<1x128xf32>
    %3 = vector.extract_strided_slice %1 {offsets = [1, 0], sizes = [1, 128], strides = [1, 1]} : vector<3x128xf32> to vector<1x128xf32>
    %4 = vector.extract_strided_slice %1 {offsets = [2, 0], sizes = [1, 128], strides = [1, 1]} : vector<3x128xf32> to vector<1x128xf32>
    %5 = arith.mulf %2, %2 : vector<1x128xf32>
    %6 = arith.mulf %3, %3 : vector<1x128xf32>
    %7 = arith.addf %5, %6 : vector<1x128xf32>
    %8 = arith.mulf %4, %4 : vector<1x128xf32>
    %9 = arith.addf %7, %8 : vector<1x128xf32>
    %cst = arith.constant 1.000000e-24 : f32
    %10 = vector.broadcast %cst : f32 to vector<1x128xf32>
    %11 = arith.maximumf %9, %10 : vector<1x128xf32>
    %12 = math.rsqrt %11 : vector<1x128xf32>
    %13 = arith.mulf %2, %12 : vector<1x128xf32>
    %14 = arith.mulf %3, %12 : vector<1x128xf32>
    %15 = arith.mulf %4, %12 : vector<1x128xf32>
    %cst_2 = arith.constant -1.7724539 : f32
    %16 = vector.broadcast %cst_2 : f32 to vector<1x128xf32>
    %17 = arith.mulf %16, %14 : vector<1x128xf32>
    %cst_3 = arith.constant 1.7724539 : f32
    %18 = vector.broadcast %cst_3 : f32 to vector<1x128xf32>
    %19 = arith.mulf %18, %15 : vector<1x128xf32>
    %cst_4 = arith.constant -1.7724539 : f32
    %20 = vector.broadcast %cst_4 : f32 to vector<1x128xf32>
    %21 = arith.mulf %20, %13 : vector<1x128xf32>
    %cst_5 = arith.constant 2.42703247 : f32
    %22 = vector.broadcast %cst_5 : f32 to vector<1x128xf32>
    %23 = arith.mulf %22, %13 : vector<1x128xf32>
    %24 = arith.mulf %23, %14 : vector<1x128xf32>
    %cst_6 = arith.constant -2.42703247 : f32
    %25 = vector.broadcast %cst_6 : f32 to vector<1x128xf32>
    %26 = arith.mulf %25, %14 : vector<1x128xf32>
    %27 = arith.mulf %26, %15 : vector<1x128xf32>
    %cst_7 = arith.constant 3.000000e+00 : f32
    %28 = vector.broadcast %cst_7 : f32 to vector<1x128xf32>
    %29 = arith.mulf %28, %15 : vector<1x128xf32>
    %30 = arith.mulf %29, %15 : vector<1x128xf32>
    %cst_8 = arith.constant 1.000000e+00 : f32
    %31 = vector.broadcast %cst_8 : f32 to vector<1x128xf32>
    %32 = arith.subf %30, %31 : vector<1x128xf32>
    %cst_9 = arith.constant 0.700623929 : f32
    %33 = vector.broadcast %cst_9 : f32 to vector<1x128xf32>
    %34 = arith.mulf %33, %32 : vector<1x128xf32>
    %cst_10 = arith.constant -2.42703247 : f32
    %35 = vector.broadcast %cst_10 : f32 to vector<1x128xf32>
    %36 = arith.mulf %35, %13 : vector<1x128xf32>
    %37 = arith.mulf %36, %15 : vector<1x128xf32>
    %38 = arith.mulf %13, %13 : vector<1x128xf32>
    %39 = arith.mulf %14, %14 : vector<1x128xf32>
    %40 = arith.subf %38, %39 : vector<1x128xf32>
    %cst_11 = arith.constant 1.21351624 : f32
    %41 = vector.broadcast %cst_11 : f32 to vector<1x128xf32>
    %42 = arith.mulf %41, %40 : vector<1x128xf32>
    %c0_12 = arith.constant 0 : index
    %c0_13 = arith.constant 0 : index
    %c0_14 = arith.constant 0 : index
    %43 = vector.load %arg2[%c0_12, %c0_13, %c0_14] : memref<1x3x128xf32, #tpu.memory_space<vmem>>, vector<1x3x128xf32>
    %44 = vector.shape_cast %43 : vector<1x3x128xf32> to vector<3x128xf32>
    %45 = arith.index_cast %arg0 : i32 to index
    %c0_15 = arith.constant 0 : index
    %46 = memref.load %arg4[%45, %c0_15] : memref<2x27xf32, #tpu.memory_space<smem>>
    %47 = arith.index_cast %arg0 : i32 to index
    %c3 = arith.constant 3 : index
    %48 = memref.load %arg4[%47, %c3] : memref<2x27xf32, #tpu.memory_space<smem>>
    %49 = arith.index_cast %arg0 : i32 to index
    %c6 = arith.constant 6 : index
    %50 = memref.load %arg4[%49, %c6] : memref<2x27xf32, #tpu.memory_space<smem>>
    %51 = arith.index_cast %arg0 : i32 to index
    %c9 = arith.constant 9 : index
    %52 = memref.load %arg4[%51, %c9] : memref<2x27xf32, #tpu.memory_space<smem>>
    %53 = arith.index_cast %arg0 : i32 to index
    %c12 = arith.constant 12 : index
    %54 = memref.load %arg4[%53, %c12] : memref<2x27xf32, #tpu.memory_space<smem>>
    %55 = arith.index_cast %arg0 : i32 to index
    %c15 = arith.constant 15 : index
    %56 = memref.load %arg4[%55, %c15] : memref<2x27xf32, #tpu.memory_space<smem>>
    %57 = arith.index_cast %arg0 : i32 to index
    %c18 = arith.constant 18 : index
    %58 = memref.load %arg4[%57, %c18] : memref<2x27xf32, #tpu.memory_space<smem>>
    %59 = arith.index_cast %arg0 : i32 to index
    %c21 = arith.constant 21 : index
    %60 = memref.load %arg4[%59, %c21] : memref<2x27xf32, #tpu.memory_space<smem>>
    %61 = arith.index_cast %arg0 : i32 to index
    %c24 = arith.constant 24 : index
    %62 = memref.load %arg4[%61, %c24] : memref<2x27xf32, #tpu.memory_space<smem>>
    %cst_16 = arith.constant 0.886226952 : f32
    %63 = arith.mulf %cst_16, %46 : f32
    %64 = vector.broadcast %48 : f32 to vector<1x128xf32>
    %65 = arith.mulf %17, %64 : vector<1x128xf32>
    %66 = vector.broadcast %63 : f32 to vector<1x128xf32>
    %67 = arith.addf %66, %65 : vector<1x128xf32>
    %68 = vector.broadcast %50 : f32 to vector<1x128xf32>
    %69 = arith.mulf %19, %68 : vector<1x128xf32>
    %70 = arith.addf %67, %69 : vector<1x128xf32>
    %71 = vector.broadcast %52 : f32 to vector<1x128xf32>
    %72 = arith.mulf %21, %71 : vector<1x128xf32>
    %73 = arith.addf %70, %72 : vector<1x128xf32>
    %74 = vector.broadcast %54 : f32 to vector<1x128xf32>
    %75 = arith.mulf %24, %74 : vector<1x128xf32>
    %76 = arith.addf %73, %75 : vector<1x128xf32>
    %77 = vector.broadcast %56 : f32 to vector<1x128xf32>
    %78 = arith.mulf %27, %77 : vector<1x128xf32>
    %79 = arith.addf %76, %78 : vector<1x128xf32>
    %80 = vector.broadcast %58 : f32 to vector<1x128xf32>
    %81 = arith.mulf %34, %80 : vector<1x128xf32>
    %82 = arith.addf %79, %81 : vector<1x128xf32>
    %83 = vector.broadcast %60 : f32 to vector<1x128xf32>
    %84 = arith.mulf %37, %83 : vector<1x128xf32>
    %85 = arith.addf %82, %84 : vector<1x128xf32>
    %86 = vector.broadcast %62 : f32 to vector<1x128xf32>
    %87 = arith.mulf %42, %86 : vector<1x128xf32>
    %88 = arith.addf %85, %87 : vector<1x128xf32>
    %89 = vector.extract_strided_slice %44 {offsets = [0, 0], sizes = [1, 128], strides = [1, 1]} : vector<3x128xf32> to vector<1x128xf32>
    %90 = arith.mulf %88, %89 : vector<1x128xf32>
    %c0_17 = arith.constant 0 : index
    %c0_18 = arith.constant 0 : index
    %c0_19 = arith.constant 0 : index
    %91 = vector.load %arg5[%c0_17, %c0_18, %c0_19] : memref<1x3x128xf32, #tpu.memory_space<vmem>>, vector<1x1x128xf32>
    %92 = vector.shape_cast %91 : vector<1x1x128xf32> to vector<1x128xf32>
    %93 = vector.shape_cast %90 : vector<1x128xf32> to vector<1x1x128xf32>
    tpu.vector_store %arg5[%c0_17, %c0_18, %c0_19], %93 {strides = array<i32>} : memref<1x3x128xf32, #tpu.memory_space<vmem>>, vector<1x1x128xf32>,
    %94 = arith.index_cast %arg0 : i32 to index
    %c1 = arith.constant 1 : index
    %95 = memref.load %arg4[%94, %c1] : memref<2x27xf32, #tpu.memory_space<smem>>
    %96 = arith.index_cast %arg0 : i32 to index
    %c4 = arith.constant 4 : index
    %97 = memref.load %arg4[%96, %c4] : memref<2x27xf32, #tpu.memory_space<smem>>
    %98 = arith.index_cast %arg0 : i32 to index
    %c7 = arith.constant 7 : index
    %99 = memref.load %arg4[%98, %c7] : memref<2x27xf32, #tpu.memory_space<smem>>
    %100 = arith.index_cast %arg0 : i32 to index
    %c10 = arith.constant 10 : index
    %101 = memref.load %arg4[%100, %c10] : memref<2x27xf32, #tpu.memory_space<smem>>
    %102 = arith.index_cast %arg0 : i32 to index
    %c13 = arith.constant 13 : index
    %103 = memref.load %arg4[%102, %c13] : memref<2x27xf32, #tpu.memory_space<smem>>
    %104 = arith.index_cast %arg0 : i32 to index
    %c16 = arith.constant 16 : index
    %105 = memref.load %arg4[%104, %c16] : memref<2x27xf32, #tpu.memory_space<smem>>
    %106 = arith.index_cast %arg0 : i32 to index
    %c19 = arith.constant 19 : index
    %107 = memref.load %arg4[%106, %c19] : memref<2x27xf32, #tpu.memory_space<smem>>
    %108 = arith.index_cast %arg0 : i32 to index
    %c22 = arith.constant 22 : index
    %109 = memref.load %arg4[%108, %c22] : memref<2x27xf32, #tpu.memory_space<smem>>
    %110 = arith.index_cast %arg0 : i32 to index
    %c25 = arith.constant 25 : index
    %111 = memref.load %arg4[%110, %c25] : memref<2x27xf32, #tpu.memory_space<smem>>
    %cst_20 = arith.constant 0.886226952 : f32
    %112 = arith.mulf %cst_20, %95 : f32
    %113 = vector.broadcast %97 : f32 to vector<1x128xf32>
    %114 = arith.mulf %17, %113 : vector<1x128xf32>
    %115 = vector.broadcast %112 : f32 to vector<1x128xf32>
    %116 = arith.addf %115, %114 : vector<1x128xf32>
    %117 = vector.broadcast %99 : f32 to vector<1x128xf32>
    %118 = arith.mulf %19, %117 : vector<1x128xf32>
    %119 = arith.addf %116, %118 : vector<1x128xf32>
    %120 = vector.broadcast %101 : f32 to vector<1x128xf32>
    %121 = arith.mulf %21, %120 : vector<1x128xf32>
    %122 = arith.addf %119, %121 : vector<1x128xf32>
    %123 = vector.broadcast %103 : f32 to vector<1x128xf32>
    %124 = arith.mulf %24, %123 : vector<1x128xf32>
    %125 = arith.addf %122, %124 : vector<1x128xf32>
    %126 = vector.broadcast %105 : f32 to vector<1x128xf32>
    %127 = arith.mulf %27, %126 : vector<1x128xf32>
    %128 = arith.addf %125, %127 : vector<1x128xf32>
    %129 = vector.broadcast %107 : f32 to vector<1x128xf32>
    %130 = arith.mulf %34, %129 : vector<1x128xf32>
    %131 = arith.addf %128, %130 : vector<1x128xf32>
    %132 = vector.broadcast %109 : f32 to vector<1x128xf32>
    %133 = arith.mulf %37, %132 : vector<1x128xf32>
    %134 = arith.addf %131, %133 : vector<1x128xf32>
    %135 = vector.broadcast %111 : f32 to vector<1x128xf32>
    %136 = arith.mulf %42, %135 : vector<1x128xf32>
    %137 = arith.addf %134, %136 : vector<1x128xf32>
    %138 = vector.extract_strided_slice %44 {offsets = [1, 0], sizes = [1, 128], strides = [1, 1]} : vector<3x128xf32> to vector<1x128xf32>
    %139 = arith.mulf %137, %138 : vector<1x128xf32>
    %c0_21 = arith.constant 0 : index
    %c1_22 = arith.constant 1 : index
    %c0_23 = arith.constant 0 : index
    %140 = vector.load %arg5[%c0_21, %c1_22, %c0_23] : memref<1x3x128xf32, #tpu.memory_space<vmem>>, vector<1x1x128xf32>
    %141 = vector.shape_cast %140 : vector<1x1x128xf32> to vector<1x128xf32>
    %142 = vector.shape_cast %139 : vector<1x128xf32> to vector<1x1x128xf32>
    tpu.vector_store %arg5[%c0_21, %c1_22, %c0_23], %142 {strides = array<i32>} : memref<1x3x128xf32, #tpu.memory_space<vmem>>, vector<1x1x128xf32>,
    %143 = arith.index_cast %arg0 : i32 to index
    %c2 = arith.constant 2 : index
    %144 = memref.load %arg4[%143, %c2] : memref<2x27xf32, #tpu.memory_space<smem>>
    %145 = arith.index_cast %arg0 : i32 to index
    %c5 = arith.constant 5 : index
    %146 = memref.load %arg4[%145, %c5] : memref<2x27xf32, #tpu.memory_space<smem>>
    %147 = arith.index_cast %arg0 : i32 to index
    %c8 = arith.constant 8 : index
    %148 = memref.load %arg4[%147, %c8] : memref<2x27xf32, #tpu.memory_space<smem>>
    %149 = arith.index_cast %arg0 : i32 to index
    %c11 = arith.constant 11 : index
    %150 = memref.load %arg4[%149, %c11] : memref<2x27xf32, #tpu.memory_space<smem>>
    %151 = arith.index_cast %arg0 : i32 to index
    %c14 = arith.constant 14 : index
    %152 = memref.load %arg4[%151, %c14] : memref<2x27xf32, #tpu.memory_space<smem>>
    %153 = arith.index_cast %arg0 : i32 to index
    %c17 = arith.constant 17 : index
    %154 = memref.load %arg4[%153, %c17] : memref<2x27xf32, #tpu.memory_space<smem>>
    %155 = arith.index_cast %arg0 : i32 to index
    %c20 = arith.constant 20 : index
    %156 = memref.load %arg4[%155, %c20] : memref<2x27xf32, #tpu.memory_space<smem>>
    %157 = arith.index_cast %arg0 : i32 to index
    %c23 = arith.constant 23 : index
    %158 = memref.load %arg4[%157, %c23] : memref<2x27xf32, #tpu.memory_space<smem>>
    %159 = arith.index_cast %arg0 : i32 to index
    %c26 = arith.constant 26 : index
    %160 = memref.load %arg4[%159, %c26] : memref<2x27xf32, #tpu.memory_space<smem>>
    %cst_24 = arith.constant 0.886226952 : f32
    %161 = arith.mulf %cst_24, %144 : f32
    %162 = vector.broadcast %146 : f32 to vector<1x128xf32>
    %163 = arith.mulf %17, %162 : vector<1x128xf32>
    %164 = vector.broadcast %161 : f32 to vector<1x128xf32>
    %165 = arith.addf %164, %163 : vector<1x128xf32>
    %166 = vector.broadcast %148 : f32 to vector<1x128xf32>
    %167 = arith.mulf %19, %166 : vector<1x128xf32>
    %168 = arith.addf %165, %167 : vector<1x128xf32>
    %169 = vector.broadcast %150 : f32 to vector<1x128xf32>
    %170 = arith.mulf %21, %169 : vector<1x128xf32>
    %171 = arith.addf %168, %170 : vector<1x128xf32>
    %172 = vector.broadcast %152 : f32 to vector<1x128xf32>
    %173 = arith.mulf %24, %172 : vector<1x128xf32>
    %174 = arith.addf %171, %173 : vector<1x128xf32>
    %175 = vector.broadcast %154 : f32 to vector<1x128xf32>
    %176 = arith.mulf %27, %175 : vector<1x128xf32>
    %177 = arith.addf %174, %176 : vector<1x128xf32>
    %178 = vector.broadcast %156 : f32 to vector<1x128xf32>
    %179 = arith.mulf %34, %178 : vector<1x128xf32>
    %180 = arith.addf %177, %179 : vector<1x128xf32>
    %181 = vector.broadcast %158 : f32 to vector<1x128xf32>
    %182 = arith.mulf %37, %181 : vector<1x128xf32>
    %183 = arith.addf %180, %182 : vector<1x128xf32>
    %184 = vector.broadcast %160 : f32 to vector<1x128xf32>
    %185 = arith.mulf %42, %184 : vector<1x128xf32>
    %186 = arith.addf %183, %185 : vector<1x128xf32>
    %187 = vector.extract_strided_slice %44 {offsets = [2, 0], sizes = [1, 128], strides = [1, 1]} : vector<3x128xf32> to vector<1x128xf32>
    %188 = arith.mulf %186, %187 : vector<1x128xf32>
    %c0_25 = arith.constant 0 : index
    %c2_26 = arith.constant 2 : index
    %c0_27 = arith.constant 0 : index
    %189 = vector.load %arg5[%c0_25, %c2_26, %c0_27] : memref<1x3x128xf32, #tpu.memory_space<vmem>>, vector<1x1x128xf32>
    %190 = vector.shape_cast %189 : vector<1x1x128xf32> to vector<1x128xf32>
    %191 = vector.shape_cast %188 : vector<1x128xf32> to vector<1x1x128xf32>
    tpu.vector_store %arg5[%c0_25, %c2_26, %c0_27], %191 {strides = array<i32>} : memref<1x3x128xf32, #tpu.memory_space<vmem>>, vector<1x1x128xf32>,
    return
  }
  func.func @transform_0(%arg0: i32, %arg1: i32) -> (i32, i32, i32) {
    %c0_i32 = arith.constant 0 : i32
    %c0_i32_0 = arith.constant 0 : i32
    return %arg0, %c0_i32, %arg1 : i32, i32, i32
  }
  func.func @transform_1(%arg0: i32, %arg1: i32) -> (i32, i32, i32) {
    %c0_i32 = arith.constant 0 : i32
    %c0_i32_0 = arith.constant 0 : i32
    return %arg0, %c0_i32, %arg1 : i32, i32, i32
  }
  func.func @transform_2(%arg0: i32, %arg1: i32) -> (i32, i32) {
    %c0_i32 = arith.constant 0 : i32
    %c0_i32_0 = arith.constant 0 : i32
    %c0_i32_1 = arith.constant 0 : i32
    return %c0_i32, %c0_i32_0 : i32, i32
  }
  func.func @transform_3(%arg0: i32, %arg1: i32) -> (i32, i32, i32) {
    %c0_i32 = arith.constant 0 : i32
    %c0_i32_0 = arith.constant 0 : i32
    return %arg0, %c0_i32, %arg1 : i32, i32, i32
  }
}

</mosaic_0001>

<llo_original>
// kernel: forward.4
$region0: #{forward.4}
  #allocation0 [shape = 'u32[]', space=smem, size = 0x4, offset = 0x4, fixed_abs, tag = 'smem constant byte address 0x4 - core index']
  #allocation1 [shape = 'u32[144,128]{1,0:T(1,128)}', space=vmem, size = 0x12000, scoped, tag = 'internal scratch']
  %s0 = inlined_call_operand.vmem [shape: f32[2,3,128], index: 0, kind: input, shape index: {}]
  %s1 = inlined_call_operand.vmem [shape: f32[2,9], index: 1, kind: input, shape index: {}]
  %s2 = inlined_call_operand.vmem [shape: f32[2,3], index: 2, kind: input, shape index: {}]
  %s3 = inlined_call_operand.vmem [shape: f32[2,3,128], index: 3, kind: output, shape index: {0}]
  %s4 = inlined_call_operand.vmem [shape: f32[2,3,128], index: 4, kind: output, shape index: {1}]
  %s5 = inlined_call_operand.vmem [shape: f32[2,2,128], index: 5, kind: output, shape index: {2}]
  %6 = xla_tuple %s3, %s4, %s5
  %s7 = sld [smem:[#allocation0]]
  $region69: #{forward.4} parent=0
    _
  %s9 = ssub.s32 1, %s7
  %s10 = scalar_select 0, %s9, %s7
  $region1: #{forward.4} parent=0
    #allocation2 [shape = 'u8[1024]{0}', space=smem, size = 0x400, scoped, tag = 'input window, operand 1, single buffered']
    #allocation3 [shape = 's32[2]{0}', space=sflag, size = 0x8, scoped, tag = 'scoped memory for forward.4']
    #allocation4 [shape = 'u8[1024]{0}', space=smem, size = 0x400, scoped, tag = 'input window, operand 2, single buffered']
    #allocation5 [shape = 's32[1]{0}', space=sflag, size = 0x4, scoped, tag = 'scoped memory for forward.4']
    %11 = vsyncpa [#allocation3], 0
    %12 = vsyncpa [#allocation5], 0
    loop: start=0, step=1, limit=4
    $region2: #{forward.4} parent=1 // loop_pre_header
      _
    $region3: #{forward.4} parent=1 // loop_header
      %s14 = sphi 0, %s18
      %p15 = scmp.ge.s32.totalorder %s14, 4
      %s21 = sphi 0, %s33
      %s22 = sphi 0, %s29
      %s23 = sphi 0, %s21
      %s24 = sphi 0, %s22
      %s25 = sphi 0, %s23
      %s26 = sphi 0, %s24
      %s38 = sphi 0, %s40
      %s41 = sphi 0, %s38
      %s42 = sphi 0, %s41
      %s58 = sphi 0, %s42
      %s62 = sphi 0, %s62
      %s64 = sphi 0, %s62
      %s65 = sphi 0, %s64
      %s79 = sphi 0, %s65
      %s83 = sphi 0, %s83
      %s85 = sphi 0, %s83
      %s86 = sphi 0, %s85
      %s100 = sphi 0, %s86
      %s108 = sphi 0, %s110
      %s111 = sphi 0, %s108
      %s112 = sphi 0, %s111
      %s128 = sphi 0, %s112
      %s136 = sphi 0, %s138
      %s139 = sphi 0, %s136
      %s140 = sphi 0, %s139
      %s156 = sphi 0, %s140
      %s164 = sphi 0, %s166
      %s167 = sphi 0, %s164
      %s168 = sphi 0, %s167
      %s184 = sphi 0, %s168
    $region4: #{forward.4} parent=1 // loop_header_branch
      %17 = sbr.rel (%p15) target = $region8
    $region5: #{forward.4} parent=1 // loop_body
      %s19 = ssub.s32 %s14, 1
      %s20 = ssub.s32 %s14, 2
      %s27 = sadd.s32 1, %s22
      %p28 = scmp.ge.s32.totalorder %s27, 1
      %s29 = scalar_select %p28, 0, %s27
      %s30 = sadd.s32 1, %s21
      %s31 = scalar_select %p28, %s30, %s21
      %p32 = scmp.ge.s32.totalorder %s31, 2
      %s33 = scalar_select %p32, 0, %s31
      %s34 = ssub.s32 %s21, %s33
      %s35 = ssub.s32 %s22, %s29
      %s36 = sor.u32 %s34, %s35
      %p37 = scmp.eq.s32.totalorder %s36, 0
      %s39 = sadd.s32 %s38, 1
      %s40 = scalar_select %p37, %s38, %s39
      %p43 = pneg %p37
      %p44 = scmp.eq.s32.totalorder %s14, 1
      %p45 = por %p43, %p44
      %p46 = scmp.ne.s32.totalorder %s38, %s41
      %p47 = scmp.eq.s32.totalorder %s14, 0
      %p48 = por %p46, %p47
      %p49 = scmp.ne.s32.totalorder %s38, %s41
      %p50 = scmp.eq.s32.totalorder %s19, 1
      %p51 = por %p49, %p50
      %p52 = scmp.ne.s32.totalorder %s41, %s42
      %p53 = scmp.eq.s32.totalorder %s19, 0
      %p54 = por %p52, %p53
      %p55 = scmp.ne.s32.totalorder %s41, %s42
      %p56 = scmp.eq.s32.totalorder %s20, 1
      %p57 = por %p55, %p56
      %p59 = scmp.ne.s32.totalorder %s42, %s58
      %p60 = scmp.eq.s32.totalorder %s20, 0
      %p61 = por %p59, %p60
      %s63 = sadd.s32 %s62, 1
      %p66 = scmp.eq.s32.totalorder %s14, 1
      %p67 = scmp.ne.s32.totalorder %s62, %s64
      %p68 = scmp.eq.s32.totalorder %s14, 0
      %p69 = por %p67, %p68
      %p70 = scmp.ne.s32.totalorder %s62, %s64
      %p71 = scmp.eq.s32.totalorder %s19, 1
      %p72 = por %p70, %p71
      %p73 = scmp.ne.s32.totalorder %s64, %s65
      %p74 = scmp.eq.s32.totalorder %s19, 0
      %p75 = por %p73, %p74
      %p76 = scmp.ne.s32.totalorder %s64, %s65
      %p77 = scmp.eq.s32.totalorder %s20, 1
      %p78 = por %p76, %p77
      %p80 = scmp.ne.s32.totalorder %s65, %s79
      %p81 = scmp.eq.s32.totalorder %s20, 0
      %p82 = por %p80, %p81
      %s84 = sadd.s32 %s83, 1
      %p87 = scmp.eq.s32.totalorder %s14, 1
      %p88 = scmp.ne.s32.totalorder %s83, %s85
      %p89 = scmp.eq.s32.totalorder %s14, 0
      %p90 = por %p88, %p89
      %p91 = scmp.ne.s32.totalorder %s83, %s85
      %p92 = scmp.eq.s32.totalorder %s19, 1
      %p93 = por %p91, %p92
      %p94 = scmp.ne.s32.totalorder %s85, %s86
      %p95 = scmp.eq.s32.totalorder %s19, 0
      %p96 = por %p94, %p95
      %p97 = scmp.ne.s32.totalorder %s85, %s86
      %p98 = scmp.eq.s32.totalorder %s20, 1
      %p99 = por %p97, %p98
      %p101 = scmp.ne.s32.totalorder %s86, %s100
      %p102 = scmp.eq.s32.totalorder %s20, 0
      %p103 = por %p101, %p102
      %s104 = ssub.s32 %s21, %s33
      %s105 = ssub.s32 %s22, %s29
      %s106 = sor.u32 %s104, %s105
      %p107 = scmp.eq.s32.totalorder %s106, 0
      %s109 = sadd.s32 %s108, 1
      %s110 = scalar_select %p107, %s108, %s109
      %p113 = pneg %p107
      %p114 = scmp.eq.s32.totalorder %s14, 1
      %p115 = por %p113, %p114
      %p116 = scmp.ne.s32.totalorder %s108, %s111
      %p117 = scmp.eq.s32.totalorder %s14, 0
      %p118 = por %p116, %p117
      %p119 = scmp.ne.s32.totalorder %s108, %s111
      %p120 = scmp.eq.s32.totalorder %s19, 1
      %p121 = por %p119, %p120
      %p122 = scmp.ne.s32.totalorder %s111, %s112
      %p123 = scmp.eq.s32.totalorder %s19, 0
      %p124 = por %p122, %p123
      %p125 = scmp.ne.s32.totalorder %s111, %s112
      %p126 = scmp.eq.s32.totalorder %s20, 1
      %p127 = por %p125, %p126
      %p129 = scmp.ne.s32.totalorder %s112, %s128
      %p130 = scmp.eq.s32.totalorder %s20, 0
      %p131 = por %p129, %p130
      %s132 = ssub.s32 %s21, %s33
      %s133 = ssub.s32 %s22, %s29
      %s134 = sor.u32 %s132, %s133
      %p135 = scmp.eq.s32.totalorder %s134, 0
      %s137 = sadd.s32 %s136, 1
      %s138 = scalar_select %p135, %s136, %s137
      %p141 = pneg %p135
      %p142 = scmp.eq.s32.totalorder %s14, 1
      %p143 = por %p141, %p142
      %p144 = scmp.ne.s32.totalorder %s136, %s139
      %p145 = scmp.eq.s32.totalorder %s14, 0
      %p146 = por %p144, %p145
      %p147 = scmp.ne.s32.totalorder %s136, %s139
      %p148 = scmp.eq.s32.totalorder %s19, 1
      %p149 = por %p147, %p148
      %p150 = scmp.ne.s32.totalorder %s139, %s140
      %p151 = scmp.eq.s32.totalorder %s19, 0
      %p152 = por %p150, %p151
      %p153 = scmp.ne.s32.totalorder %s139, %s140
      %p154 = scmp.eq.s32.totalorder %s20, 1
      %p155 = por %p153, %p154
      %p157 = scmp.ne.s32.totalorder %s140, %s156
      %p158 = scmp.eq.s32.totalorder %s20, 0
      %p159 = por %p157, %p158
      %s160 = ssub.s32 %s21, %s33
      %s161 = ssub.s32 %s22, %s29
      %s162 = sor.u32 %s160, %s161
      %p163 = scmp.eq.s32.totalorder %s162, 0
      %s165 = sadd.s32 %s164, 1
      %s166 = scalar_select %p163, %s164, %s165
      %p169 = pneg %p163
      %p170 = scmp.eq.s32.totalorder %s14, 1
      %p171 = por %p169, %p170
      %p172 = scmp.ne.s32.totalorder %s164, %s167
      %p173 = scmp.eq.s32.totalorder %s14, 0
      %p174 = por %p172, %p173
      %p175 = scmp.ne.s32.totalorder %s164, %s167
      %p176 = scmp.eq.s32.totalorder %s19, 1
      %p177 = por %p175, %p176
      %p178 = scmp.ne.s32.totalorder %s167, %s168
      %p179 = scmp.eq.s32.totalorder %s19, 0
      %p180 = por %p178, %p179
      %p181 = scmp.ne.s32.totalorder %s167, %s168
      %p182 = scmp.eq.s32.totalorder %s20, 1
      %p183 = por %p181, %p182
      %p185 = scmp.ne.s32.totalorder %s168, %s184
      %p186 = scmp.eq.s32.totalorder %s20, 0
      %p187 = por %p185, %p186
      %p188 = scmp.le.s32.totalorder 1, %s14
      %p189 = scmp.lt.s32.totalorder %s14, 3
      %p190 = pnand %p188, %p189
      %p191 = pneg %p190
      // Predicated region
      $region9: #{forward.4} parent=5 // pred_check
        _
      $region10: #{forward.4} parent=5 // pred_check_branch
        %193 = sbr.rel (%p190) target = $region12
      $region11: #{forward.4} parent=5 // pred_region
        %s194 = ssub.s32 %s14, 1
        // Predicated region
        $region13: #{forward.4} parent=11 // pred_check
          %p195 = pneg %p75
        $region14: #{forward.4} parent=11 // pred_check_branch
          %197 = sbr.rel (%p195) target = $region16
        $region15: #{forward.4} parent=11 // pred_region
          %s199 = ssub.s32 32, 32
          %200 = vsyncadd [#allocation3], %s199
          %s202 = sshll.u32 %s1, 4
          %s203 = int_to_ptr.vmem [resolvable:$true] %s202
          %205 = dma.vmem_to_smem %s203, 32, [#allocation2], [#allocation3]
        $region16: #{forward.4} parent=11 // pred_fallthru
          _
        // Predicated region
        $region17: #{forward.4} parent=11 // pred_check
          %p206 = pneg %p96
        $region18: #{forward.4} parent=11 // pred_check_branch
          %208 = sbr.rel (%p206) target = $region20
        $region19: #{forward.4} parent=11 // pred_region
          %s210 = ssub.s32 32, 32
          %211 = vsyncadd [#allocation5], %s210
          %s213 = sshll.u32 %s2, 4
          %s214 = int_to_ptr.vmem [resolvable:$true] %s213
          %216 = dma.vmem_to_smem %s214, 32, [#allocation4], [#allocation5]
        $region20: #{forward.4} parent=11 // pred_fallthru
          _
      $region12: #{forward.4} parent=5 // pred_fallthru
        _
      %p217 = scmp.lt.s32.totalorder %s14, 2
      // Predicated region
      $region21: #{forward.4} parent=5 // pred_check
        %p218 = pneg %p217
      $region22: #{forward.4} parent=5 // pred_check_branch
        %220 = sbr.rel (%p218) target = $region24
      $region23: #{forward.4} parent=5 // pred_region
        // Predicated region
        $region25: #{forward.4} parent=23 // pred_check
          %p221 = pneg %p48
        $region26: #{forward.4} parent=23 // pred_check_branch
          %223 = sbr.rel (%p221) target = $region28
        $region27: #{forward.4} parent=23 // pred_region
          %p224 = scmp.lt.s32.totalorder %s21, 1
          %s225 = scalar_select %p224, %s21, 1
          %p226 = scmp.lt.s32.totalorder %s22, 0
          %s227 = scalar_select %p226, %s22, 0
          %s228 = sadd.s32 %s227, %s225
          %s229 = smul.addr %s228, 4
          %s230 = scalar_lea.vmem %s0, %s229
        $region28: #{forward.4} parent=23 // pred_fallthru
          _
      $region24: #{forward.4} parent=5 // pred_fallthru
        _
      %p231 = scmp.le.s32.totalorder 1, %s14
      %p232 = scmp.lt.s32.totalorder %s14, 3
      %p233 = pnand %p231, %p232
      %p234 = pneg %p233
      // Predicated region
      $region29: #{forward.4} parent=5 // pred_check
        _
      $region30: #{forward.4} parent=5 // pred_check_branch
        %236 = sbr.rel (%p233) target = $region32
      $region31: #{forward.4} parent=5 // pred_region
        %s237 = ssub.s32 %s14, 1
        // Predicated region
        $region33: #{forward.4} parent=31 // pred_check
          %p238 = pneg %p75
        $region34: #{forward.4} parent=31 // pred_check_branch
          %240 = sbr.rel (%p238) target = $region36
        $region35: #{forward.4} parent=31 // pred_region
          %241 = dma.done [#allocation3], 32
        $region36: #{forward.4} parent=31 // pred_fallthru
          _
        // Predicated region
        $region37: #{forward.4} parent=31 // pred_check
          %p242 = pneg %p96
        $region38: #{forward.4} parent=31 // pred_check_branch
          %244 = sbr.rel (%p242) target = $region40
        $region39: #{forward.4} parent=31 // pred_region
          %245 = dma.done [#allocation5], 32
        $region40: #{forward.4} parent=31 // pred_fallthru
          _
        %246 = sfence
        %p247 = scmp.lt.s32.totalorder %s23, 1
        %s248 = scalar_select %p247, %s23, 1
        %p249 = scmp.lt.s32.totalorder %s24, 0
        %s250 = scalar_select %p249, %s24, 0
        %s251 = sadd.s32 %s250, %s248
        %s252 = smul.addr %s251, 4
        %s253 = scalar_lea.vmem %s0, %s252
        %p254 = pneg %p54
        %p255 = pneg %p51
        %p256 = pneg %p75
        %p257 = pneg %p72
        %p258 = pneg %p96
        %p259 = pneg %p93
        %p260 = pneg %p124
        %p261 = pneg %p121
        %p262 = scmp.lt.s32.totalorder %s23, 1
        %s263 = scalar_select %p262, %s23, 1
        %p264 = scmp.lt.s32.totalorder %s24, 0
        %s265 = scalar_select %p264, %s24, 0
        %s266 = sadd.s32 %s265, %s263
        %s267 = smul.addr %s266, 4
        %s268 = scalar_lea.vmem %s3, %s267
        %p269 = pneg %p152
        %p270 = pneg %p149
        %p271 = scmp.lt.s32.totalorder %s23, 1
        %s272 = scalar_select %p271, %s23, 1
        %p273 = scmp.lt.s32.totalorder %s24, 0
        %s274 = scalar_select %p273, %s24, 0
        %s275 = sadd.s32 %s274, %s272
        %s276 = smul.addr %s275, 4
        %s277 = scalar_lea.vmem %s4, %s276
        %p278 = pneg %p180
        %p279 = pneg %p177
        %p280 = scmp.lt.s32.totalorder %s23, 1
        %s281 = scalar_select %p280, %s23, 1
        %p282 = scmp.lt.s32.totalorder %s24, 0
        %s283 = scalar_select %p282, %s24, 0
        %s284 = sadd.s32 %s283, %s281
        %s285 = smul.addr %s284, 2
        %s286 = scalar_lea.vmem %s5, %s285
        %p287 = scmp.lt.s32.totalorder %s23, 1
        %s288 = scalar_select %p287, %s23, 1
        %p289 = scmp.lt.s32.totalorder %s24, 0
        %s290 = scalar_select %p289, %s24, 0
        %s291 = sadd.s32 %s290, %s288
        %s292 = smul.addr %s291, 4
        %s293 = scalar_lea.vmem %s0, %s292
        %p294 = scmp.lt.s32.totalorder %s23, 1
        %s295 = scalar_select %p294, %s23, 1
        %p296 = scmp.lt.s32.totalorder %s24, 0
        %s297 = scalar_select %p296, %s24, 0
        %s298 = sadd.s32 %s297, %s295
        %s299 = smul.addr %s298, 4
        %s300 = scalar_lea.vmem %s3, %s299
        %p301 = scmp.lt.s32.totalorder %s23, 1
        %s302 = scalar_select %p301, %s23, 1
        %p303 = scmp.lt.s32.totalorder %s24, 0
        %s304 = scalar_select %p303, %s24, 0
        %s305 = sadd.s32 %s304, %s302
        %s306 = smul.addr %s305, 4
        %s307 = scalar_lea.vmem %s4, %s306
        %p308 = scmp.lt.s32.totalorder %s23, 1
        %s309 = scalar_select %p308, %s23, 1
        %p310 = scmp.lt.s32.totalorder %s24, 0
        %s311 = scalar_select %p310, %s24, 0
        %s312 = sadd.s32 %s311, %s309
        %s313 = smul.addr %s312, 2
        %s314 = scalar_lea.vmem %s5, %s313
        %v315 = vld [vmem:[%s293] sm:$0x7]
        %s316 = smul.u32 %s23, 128
        %s317 = sld [smem:[#allocation2 + %s316]]
        %s318 = sadd.s32 %s316, 1
        %s319 = sld [smem:[#allocation2 + %s318]]
        %s320 = sadd.s32 %s316, 2
        %s321 = sld [smem:[#allocation2 + %s320]]
        %s322 = sadd.s32 %s316, 3
        %s323 = sld [smem:[#allocation2 + %s322]]
        %s324 = sadd.s32 %s316, 4
        %s325 = sld [smem:[#allocation2 + %s324]]
        %s326 = sadd.s32 %s316, 5
        %s327 = sld [smem:[#allocation2 + %s326]]
        %s328 = sadd.s32 %s316, 6
        %s329 = sld [smem:[#allocation2 + %s328]]
        %s330 = sadd.s32 %s316, 7
        %s331 = sld [smem:[#allocation2 + %s330]]
        %s332 = sadd.s32 %s316, 8
        %s333 = sld [smem:[#allocation2 + %s332]]
        %s334 = sld [smem:[#allocation4 + %s316]]
        %s335 = sld [smem:[#allocation4 + %s318]]
        %s336 = sld [smem:[#allocation4 + %s320]]
        %v337 = vstv %s317
        %v338 = vmul.f32 %v315, %v337
        %v339 = vstv %s323
        %v340 = vmul.f32 %v315, %v339
        %v342 = vrot.slane %v340, 1
        %v344 = vadd.f32 %v338, %v342
        %v345 = vstv %s329
        %v346 = vmul.f32 %v315, %v345
        %v348 = vrot.slane %v346, 2
        %v350 = vadd.f32 %v344, %v348
        %v351 = vstv %s319
        %v352 = vmul.f32 %v315, %v351
        %v353 = vstv %s325
        %v354 = vmul.f32 %v315, %v353
        %v356 = vrot.slane %v354, 1
        %v358 = vadd.f32 %v352, %v356
        %v359 = vstv %s331
        %v360 = vmul.f32 %v315, %v359
        %v362 = vrot.slane %v360, 2
        %v364 = vadd.f32 %v358, %v362
        %v365 = vstv %s321
        %v366 = vmul.f32 %v315, %v365
        %v367 = vstv %s327
        %v368 = vmul.f32 %v315, %v367
        %v370 = vrot.slane %v368, 1
        %v372 = vadd.f32 %v366, %v370
        %v373 = vstv %s333
        %v374 = vmul.f32 %v315, %v373
        %v376 = vrot.slane %v374, 2
        %v378 = vadd.f32 %v372, %v376
        %379 = vst [vmem:[%s300] sm:$0x1] %v350
        %380 = vst [vmem:[%s300 + $0x1] sm:$0x1] %v364
        %381 = vst [vmem:[%s300 + $0x2] sm:$0x1] %v378
        %v382 = vstv %s334
        %v383 = vadd.f32 %v350, %v382
        %v384 = vstv %s335
        %v385 = vadd.f32 %v364, %v384
        %v386 = vstv %s336
        %v387 = vadd.f32 %v378, %v386
        %v388 = vsub.f32 10.0, %v387
        %389 = vst [vmem:[%s307] sm:$0x1] %v383
        %390 = vst [vmem:[%s307 + $0x1] sm:$0x1] %v385
        %391 = vst [vmem:[%s307 + $0x2] sm:$0x1] %v388
        %v392 = vrcp.pop %v388
        %v393 = vmul.f32 1.0, %v392
        %v394 = vmul.f32 %v383, 1015.0
        %v395 = vmul.f32 %v394, %v393
        %v396 = vadd.f32 %v395, 112.0
        %397 = vst [vmem:[%s314] sm:$0x1] %v396
        %v398 = vmul.f32 %v385, 1015.0
        %v399 = vmul.f32 %v398, %v393
        %v400 = vadd.f32 %v399, 112.0
        %401 = vst [vmem:[%s314 + $0x1] sm:$0x1] %v400
        %p402 = scmp.lt.s32.totalorder %s23, 1
        %s403 = scalar_select %p402, %s23, 1
        %p404 = scmp.lt.s32.totalorder %s24, 0
        %s405 = scalar_select %p404, %s24, 0
        %s406 = sadd.s32 %s405, %s403
        %s407 = smul.addr %s406, 4
        %s408 = scalar_lea.vmem %s3, %s407
        %p409 = scmp.lt.s32.totalorder %s23, 1
        %s410 = scalar_select %p409, %s23, 1
        %p411 = scmp.lt.s32.totalorder %s24, 0
        %s412 = scalar_select %p411, %s24, 0
        %s413 = sadd.s32 %s412, %s410
        %s414 = smul.addr %s413, 4
        %s415 = scalar_lea.vmem %s4, %s414
        %p416 = scmp.lt.s32.totalorder %s23, 1
        %s417 = scalar_select %p416, %s23, 1
        %p418 = scmp.lt.s32.totalorder %s24, 0
        %s419 = scalar_select %p418, %s24, 0
        %s420 = sadd.s32 %s419, %s417
        %s421 = smul.addr %s420, 2
        %s422 = scalar_lea.vmem %s5, %s421
        // Predicated region
        $region41: #{forward.4} parent=31 // pred_check
          %p423 = pneg %p121
        $region42: #{forward.4} parent=31 // pred_check_branch
          %425 = sbr.rel (%p423) target = $region44
        $region43: #{forward.4} parent=31 // pred_region
          _
        $region44: #{forward.4} parent=31 // pred_fallthru
          _
        // Predicated region
        $region45: #{forward.4} parent=31 // pred_check
          %p426 = pneg %p149
        $region46: #{forward.4} parent=31 // pred_check_branch
          %428 = sbr.rel (%p426) target = $region48
        $region47: #{forward.4} parent=31 // pred_region
          _
        $region48: #{forward.4} parent=31 // pred_fallthru
          _
        // Predicated region
        $region49: #{forward.4} parent=31 // pred_check
          %p429 = pneg %p177
        $region50: #{forward.4} parent=31 // pred_check_branch
          %431 = sbr.rel (%p429) target = $region52
        $region51: #{forward.4} parent=31 // pred_region
          _
        $region52: #{forward.4} parent=31 // pred_fallthru
          _
      $region32: #{forward.4} parent=5 // pred_fallthru
        _
      %p432 = scmp.le.s32.totalorder 2, %s14
      // Predicated region
      $region53: #{forward.4} parent=5 // pred_check
        %p433 = pneg %p432
      $region54: #{forward.4} parent=5 // pred_check_branch
        %435 = sbr.rel (%p433) target = $region56
      $region55: #{forward.4} parent=5 // pred_region
        %s436 = ssub.s32 %s14, 2
        // Predicated region
        $region57: #{forward.4} parent=55 // pred_check
          %p437 = pneg %p127
        $region58: #{forward.4} parent=55 // pred_check_branch
          %439 = sbr.rel (%p437) target = $region60
        $region59: #{forward.4} parent=55 // pred_region
          %p440 = scmp.lt.s32.totalorder %s25, 1
          %s441 = scalar_select %p440, %s25, 1
          %p442 = scmp.lt.s32.totalorder %s26, 0
          %s443 = scalar_select %p442, %s26, 0
          %s444 = sadd.s32 %s443, %s441
          %s445 = smul.addr %s444, 4
          %s446 = scalar_lea.vmem %s3, %s445
        $region60: #{forward.4} parent=55 // pred_fallthru
          _
        // Predicated region
        $region61: #{forward.4} parent=55 // pred_check
          %p447 = pneg %p155
        $region62: #{forward.4} parent=55 // pred_check_branch
          %449 = sbr.rel (%p447) target = $region64
        $region63: #{forward.4} parent=55 // pred_region
          %p450 = scmp.lt.s32.totalorder %s25, 1
          %s451 = scalar_select %p450, %s25, 1
          %p452 = scmp.lt.s32.totalorder %s26, 0
          %s453 = scalar_select %p452, %s26, 0
          %s454 = sadd.s32 %s453, %s451
          %s455 = smul.addr %s454, 4
          %s456 = scalar_lea.vmem %s4, %s455
        $region64: #{forward.4} parent=55 // pred_fallthru
          _
        // Predicated region
        $region65: #{forward.4} parent=55 // pred_check
          %p457 = pneg %p183
        $region66: #{forward.4} parent=55 // pred_check_branch
          %459 = sbr.rel (%p457) target = $region68
        $region67: #{forward.4} parent=55 // pred_region
          %p460 = scmp.lt.s32.totalorder %s25, 1
          %s461 = scalar_select %p460, %s25, 1
          %p462 = scmp.lt.s32.totalorder %s26, 0
          %s463 = scalar_select %p462, %s26, 0
          %s464 = sadd.s32 %s463, %s461
          %s465 = smul.addr %s464, 2
          %s466 = scalar_lea.vmem %s5, %s465
        $region68: #{forward.4} parent=55 // pred_fallthru
          _
      $region56: #{forward.4} parent=5 // pred_fallthru
        _
    $region6: #{forward.4} parent=1 // loop_footer
      %s18 = sadd.s32 1, %s14
    $region7: #{forward.4} parent=1 // loop_footer_branch
      %13 = sbr.rel target = $region3
    $region8: #{forward.4} parent=1 // loop_exit
      _
    %467 = vsyncpa [#allocation3], 1
    %s468 = scalar_lea.sflag [#allocation3], 1
    %469 = vsyncpa %s468, 1
    %470 = vsyncpa [#allocation5], 1

// kernel: forward.3
$region0: #{forward.3}
  #allocation0 [shape = 'u32[]', space=smem, size = 0x4, offset = 0x4, fixed_abs, tag = 'smem constant byte address 0x4 - core index']
  #allocation1 [shape = 'u32[144,128]{1,0:T(1,128)}', space=vmem, size = 0x12000, scoped, tag = 'internal scratch']
  %s0 = inlined_call_operand.vmem [shape: bf16[2,144], index: 0, kind: input, shape index: {}]
  %s1 = inlined_call_operand.vmem [shape: bf16[144,384], index: 1, kind: input, shape index: {}]
  %s2 = inlined_call_operand.vmem [shape: f32[1,384], index: 2, kind: input, shape index: {}]
  %s3 = inlined_call_operand.vmem [shape: bf16[2,80], index: 3, kind: input, shape index: {}]
  %s4 = inlined_call_operand.vmem [shape: bf16[80,384], index: 4, kind: input, shape index: {}]
  %s5 = inlined_call_operand.vmem [shape: f32[1,384], index: 5, kind: input, shape index: {}]
  %s6 = inlined_call_operand.vmem [shape: f32[2,384], index: 6, kind: output, shape index: {0}]
  %s7 = inlined_call_operand.vmem [shape: f32[2,384], index: 7, kind: output, shape index: {1}]
  %8 = xla_tuple %s6, %s7
  %s9 = sld [smem:[#allocation0]]
  $region42: #{forward.3} parent=0
    _
  %s11 = ssub.s32 1, %s9
  %s12 = scalar_select 0, %s11, %s9
  // Predicated region
  $region2: #{forward.3} parent=0 // pred_check
    _
  $region3: #{forward.3} parent=0 // pred_check_branch
    %14 = sbr.rel (0) target = $region5
  $region4: #{forward.3} parent=0 // pred_region
    _
  $region5: #{forward.3} parent=0 // pred_fallthru
    _
  // Predicated region
  $region6: #{forward.3} parent=0 // pred_check
    _
  $region7: #{forward.3} parent=0 // pred_check_branch
    %16 = sbr.rel (0) target = $region9
  $region8: #{forward.3} parent=0 // pred_region
    _
  $region9: #{forward.3} parent=0 // pred_fallthru
    _
  // Predicated region
  $region10: #{forward.3} parent=0 // pred_check
    _
  $region11: #{forward.3} parent=0 // pred_check_branch
    %18 = sbr.rel (0) target = $region13
  $region12: #{forward.3} parent=0 // pred_region
    _
  $region13: #{forward.3} parent=0 // pred_fallthru
    _
  // Predicated region
  $region14: #{forward.3} parent=0 // pred_check
    _
  $region15: #{forward.3} parent=0 // pred_check_branch
    %20 = sbr.rel (0) target = $region17
  $region16: #{forward.3} parent=0 // pred_region
    _
  $region17: #{forward.3} parent=0 // pred_fallthru
    _
  // Predicated region
  $region18: #{forward.3} parent=0 // pred_check
    _
  $region19: #{forward.3} parent=0 // pred_check_branch
    %22 = sbr.rel (0) target = $region21
  $region20: #{forward.3} parent=0 // pred_region
    _
  $region21: #{forward.3} parent=0 // pred_fallthru
    _
  // Predicated region
  $region22: #{forward.3} parent=0 // pred_check
    _
  $region23: #{forward.3} parent=0 // pred_check_branch
    %24 = sbr.rel (0) target = $region25
  $region24: #{forward.3} parent=0 // pred_region
    _
  $region25: #{forward.3} parent=0 // pred_fallthru
    _
  %v26 = vld [vmem:[%s0] sm:$0x3]
  %v27 = vld [vmem:[%s1] sm:$0xff]
  %v28 = vld [vmem:[%s1 + $0x8] sm:$0xf]
  %v29 = vld [vmem:[%s1 + $0xc] sm:$0xff]
  %v30 = vld [vmem:[%s1 + $0x14] sm:$0xf]
  %v31 = vld [vmem:[%s1 + $0x18] sm:$0xff]
  %v32 = vld [vmem:[%s1 + $0x20] sm:$0xf]
  %v33 = vld [vmem:[%s1 + $0x24] sm:$0xff]
  %v34 = vld [vmem:[%s1 + $0x2c] sm:$0xf]
  %v35 = vld [vmem:[%s1 + $0x30] sm:$0xff]
  %v36 = vld [vmem:[%s1 + $0x38] sm:$0xf]
  %v37 = vld [vmem:[%s1 + $0x3c] sm:$0xff]
  %v38 = vld [vmem:[%s1 + $0x44] sm:$0xf]
  %v39 = vld [vmem:[%s1 + $0x48] sm:$0xff]
  %v40 = vld [vmem:[%s1 + $0x50] sm:$0xf]
  %v41 = vld [vmem:[%s1 + $0x54] sm:$0xff]
  %v42 = vld [vmem:[%s1 + $0x5c] sm:$0xf]
  %v43 = vld [vmem:[%s1 + $0x60] sm:$0xff]
  %v44 = vld [vmem:[%s1 + $0x68] sm:$0xf]
  %v45 = vld [vmem:[%s1 + $0x6c] sm:$0xff]
  %v46 = vld [vmem:[%s1 + $0x74] sm:$0xf]
  %v47 = vld [vmem:[%s1 + $0x78] sm:$0xff]
  %v48 = vld [vmem:[%s1 + $0x80] sm:$0xf]
  %v49 = vld [vmem:[%s1 + $0x84] sm:$0xff]
  %v50 = vld [vmem:[%s1 + $0x8c] sm:$0xf]
  %v51 = vld [vmem:[%s1 + $0x90] sm:$0xff]
  %v52 = vld [vmem:[%s1 + $0x98] sm:$0xf]
  %v53 = vld [vmem:[%s1 + $0x9c] sm:$0xff]
  %v54 = vld [vmem:[%s1 + $0xa4] sm:$0xf]
  %v55 = vld [vmem:[%s1 + $0xa8] sm:$0xff]
  %v56 = vld [vmem:[%s1 + $0xb0] sm:$0xf]
  %v57 = vld [vmem:[%s1 + $0xb4] sm:$0xff]
  %v58 = vld [vmem:[%s1 + $0xbc] sm:$0xf]
  %v59 = vld [vmem:[%s1 + $0xc0] sm:$0xff]
  %v60 = vld [vmem:[%s1 + $0xc8] sm:$0xf]
  %v61 = vld [vmem:[%s1 + $0xcc] sm:$0xff]
  %v62 = vld [vmem:[%s1 + $0xd4] sm:$0xf]
  %v63 = vld [vmem:[%s2] sm:$0x7]
  %v65 = vlaneseq
  %v66 = vshrl.u32 %v65, 7
  %v67 = vsub.s32 0, %v66
  %v68 = vrot.slane %v63, %v67
  %v69 = vlaneseq
  %v70 = vshrl.u32 %v69, 7
  %v71 = vsub.s32 1, %v70
  %v72 = vrot.slane %v63, %v71
  %v73 = vlaneseq
  %v74 = vshrl.u32 %v73, 7
  %v75 = vsub.s32 2, %v74
  %v76 = vrot.slane %v63, %v75
  %v82 = vunpack.c.l.s4 1966171168
  %v83 = vunpack.c.0.s8 %v82
  %v84 = vlaneseq
  %v85 = vshrl.u32 %v84, 7
  %v86 = vsub.s32 %v83, %v85
  %v87 = vrot.slane %v26, %v86
  %v88 = vcombine.high %v87, %v87
  %v90 = vunpack.c.l.s4 1966171168
  %v91 = vunpack.c.0.s8 %v90
  %v92 = vlaneseq
  %v93 = vshrl.u32 %v92, 7
  %v94 = vsub.s32 %v91, %v93
  %v95 = vrot.slane %v87, %v94
  %v97 = vunpack.c.l.s4 1966171168
  %v98 = vunpack.c.0.s8 %v97
  %v99 = vlaneseq
  %v100 = vshrl.u32 %v99, 7
  %v101 = vsub.s32 %v98, %v100
  %v102 = vrot.slane %v88, %v101
  %v140 = vunpack.c.l.b16 %v27
  %v141 = vunpack.c.h.b16 %v27
  %v142 = vunpack.c.l.b16 %v28
  %v143 = vunpack.c.l.b16 %v29
  %v144 = vunpack.c.h.b16 %v29
  %v145 = vunpack.c.l.b16 %v30
  %v146 = vunpack.c.l.b16 %v31
  %v147 = vunpack.c.h.b16 %v31
  %v148 = vunpack.c.l.b16 %v32
  %v149 = vunpack.c.l.b16 %v33
  %v150 = vunpack.c.h.b16 %v33
  %v151 = vunpack.c.l.b16 %v34
  %v152 = vunpack.c.l.b16 %v35
  %v153 = vunpack.c.h.b16 %v35
  %v154 = vunpack.c.l.b16 %v36
  %v155 = vunpack.c.l.b16 %v37
  %v156 = vunpack.c.h.b16 %v37
  %v157 = vunpack.c.l.b16 %v38
  %v158 = vunpack.c.l.b16 %v39
  %v159 = vunpack.c.h.b16 %v39
  %v160 = vunpack.c.l.b16 %v40
  %v161 = vunpack.c.l.b16 %v41
  %v162 = vunpack.c.h.b16 %v41
  %v163 = vunpack.c.l.b16 %v42
  %v164 = vunpack.c.l.b16 %v43
  %v165 = vunpack.c.h.b16 %v43
  %v166 = vunpack.c.l.b16 %v44
  %v167 = vunpack.c.l.b16 %v45
  %v168 = vunpack.c.h.b16 %v45
  %v169 = vunpack.c.l.b16 %v46
  %v170 = vunpack.c.l.b16 %v47
  %v171 = vunpack.c.h.b16 %v47
  %v172 = vunpack.c.l.b16 %v48
  %v173 = vunpack.c.l.b16 %v49
  %v174 = vunpack.c.h.b16 %v49
  %v175 = vunpack.c.l.b16 %v50
  %v176 = vunpack.c.l.b16 %v51
  %v177 = vunpack.c.h.b16 %v51
  %v178 = vunpack.c.l.b16 %v52
  %v179 = vunpack.c.l.b16 %v53
  %v180 = vunpack.c.h.b16 %v53
  %v181 = vunpack.c.l.b16 %v54
  %v182 = vunpack.c.l.b16 %v55
  %v183 = vunpack.c.h.b16 %v55
  %v184 = vunpack.c.l.b16 %v56
  %v185 = vunpack.c.l.b16 %v57
  %v186 = vunpack.c.h.b16 %v57
  %v187 = vunpack.c.l.b16 %v58
  %v188 = vunpack.c.l.b16 %v59
  %v189 = vunpack.c.h.b16 %v59
  %v190 = vunpack.c.l.b16 %v60
  %v191 = vunpack.c.l.b16 %v61
  %v192 = vunpack.c.h.b16 %v61
  %v193 = vunpack.c.l.b16 %v62
  %v194 = vpack.c.b16 %v143, %v140
  %v195 = vpack.c.b16 %v144, %v141
  %v196 = vpack.c.b16 %v145, %v142
  %v197 = vpack.c.b16 %v149, %v146
  %v198 = vpack.c.b16 %v150, %v147
  %v199 = vpack.c.b16 %v151, %v148
  %v200 = vpack.c.b16 %v155, %v152
  %v201 = vpack.c.b16 %v156, %v153
  %v202 = vpack.c.b16 %v157, %v154
  %v203 = vpack.c.b16 %v161, %v158
  %v204 = vpack.c.b16 %v162, %v159
  %v205 = vpack.c.b16 %v163, %v160
  %v206 = vpack.c.b16 %v167, %v164
  %v207 = vpack.c.b16 %v168, %v165
  %v208 = vpack.c.b16 %v169, %v166
  %v209 = vpack.c.b16 %v173, %v170
  %v210 = vpack.c.b16 %v174, %v171
  %v211 = vpack.c.b16 %v175, %v172
  %v212 = vpack.c.b16 %v179, %v176
  %v213 = vpack.c.b16 %v180, %v177
  %v214 = vpack.c.b16 %v181, %v178
  %v215 = vpack.c.b16 %v185, %v182
  %v216 = vpack.c.b16 %v186, %v183
  %v217 = vpack.c.b16 %v187, %v184
  %v218 = vpack.c.b16 %v191, %v188
  %v219 = vpack.c.b16 %v192, %v189
  %v220 = vpack.c.b16 %v193, %v190
  %vm248 = vcmask 130048
  %v250 = vsel %vm248, %v102, 0
  %252 = vmatprep.subr.bf16.mxu0 %v195
  %253 = vmatpush1.bf16.msra.mxu0 %v194
  %254 = vmatprep.subr.bf16.mxu0 %v198
  %255 = vmatpush1.bf16.msra.mxu0 %v197
  %256 = vmatprep.subr.bf16.mxu0 %v201
  %257 = vmatpush1.bf16.msra.mxu0 %v200
  %258 = vmatprep.subr.bf16.mxu0 %v204
  %259 = vmatpush1.bf16.msra.mxu0 %v203
  %260 = vmatprep.subr.bf16.mxu0 %v207
  %261 = vmatpush1.bf16.msra.mxu0 %v206
  %262 = vmatprep.subr.bf16.mxu0 %v210
  %263 = vmatpush1.bf16.msra.mxu0 %v209
  %264 = vmatprep.subr.bf16.mxu0 %v213
  %265 = vmatpush1.bf16.msra.mxu0 %v212
  %266 = vmatprep.subr.bf16.mxu0 %v216
  %267 = vmatpush1.bf16.msra.mxu0 %v215
  %268 = vmatprep.subr.bf16.mxu0 %v219
  %269 = vmatpush1.bf16.msra.mxu0 %v218
  %270 = vmatprep.subr.bf16.mxu0 0
  %271 = vmatpush1.bf16.msra.mxu0 0
  %272 = vmatprep.subr.bf16.mxu0 0
  %273 = vmatpush1.bf16.msra.mxu0 0
  %274 = vmatprep.subr.bf16.mxu0 0
  %275 = vmatpush1.bf16.msra.mxu0 0
  %276 = vmatprep.subr.bf16.mxu0 0
  %277 = vmatpush1.bf16.msra.mxu0 0
  %278 = vmatprep.subr.bf16.mxu0 0
  %279 = vmatpush1.bf16.msra.mxu0 0
  %280 = vmatprep.subr.bf16.mxu0 0
  %281 = vmatpush1.bf16.msra.mxu0 0
  %282 = vmatprep.subr.bf16.mxu0 0
  %283 = vmatpush1.bf16.msra.mxu0 0
  %284 = vmatprep.mubr.bf16.mxu0 %v250
  %285 = vmatmul.mubr.bf16.gmra.mrb[0].mxu0 %v95
  %v286 = vpop.f32.mrb[0].mxu0
  %v287 = vadd.f32 %v68, %v286
  %v288 = vpop.f32.mrb[0].mxu0
  %v289 = vadd.f32 %v72, %v288
  %v290 = vpop.f32.mrb[0].mxu0
  %v291 = vpop.f32.mrb[0].mxu0
  %292 = vdwg.mxu0
  %293 = vmatprep.subr.bf16.mxu0 0
  %294 = vmatpush1.bf16.msra.mxu0 %v196
  %295 = vmatprep.subr.bf16.mxu0 0
  %296 = vmatpush1.bf16.msra.mxu0 %v199
  %297 = vmatprep.subr.bf16.mxu0 0
  %298 = vmatpush1.bf16.msra.mxu0 %v202
  %299 = vmatprep.subr.bf16.mxu0 0
  %300 = vmatpush1.bf16.msra.mxu0 %v205
  %301 = vmatprep.subr.bf16.mxu0 0
  %302 = vmatpush1.bf16.msra.mxu0 %v208
  %303 = vmatprep.subr.bf16.mxu0 0
  %304 = vmatpush1.bf16.msra.mxu0 %v211
  %305 = vmatprep.subr.bf16.mxu0 0
  %306 = vmatpush1.bf16.msra.mxu0 %v214
  %307 = vmatprep.subr.bf16.mxu0 0
  %308 = vmatpush1.bf16.msra.mxu0 %v217
  %309 = vmatprep.subr.bf16.mxu0 0
  %310 = vmatpush1.bf16.msra.mxu0 %v220
  %311 = vmatprep.subr.bf16.mxu0 0
  %312 = vmatpush1.bf16.msra.mxu0 0
  %313 = vmatprep.subr.bf16.mxu0 0
  %314 = vmatpush1.bf16.msra.mxu0 0
  %315 = vmatprep.subr.bf16.mxu0 0
  %316 = vmatpush1.bf16.msra.mxu0 0
  %317 = vmatprep.subr.bf16.mxu0 0
  %318 = vmatpush1.bf16.msra.mxu0 0
  %319 = vmatprep.subr.bf16.mxu0 0
  %320 = vmatpush1.bf16.msra.mxu0 0
  %321 = vmatprep.subr.bf16.mxu0 0
  %322 = vmatpush1.bf16.msra.mxu0 0
  %323 = vmatprep.subr.bf16.mxu0 0
  %324 = vmatpush1.bf16.msra.mxu0 0
  %325 = vmatprep.mubr.bf16.mxu0 %v250
  %326 = vmatmul.mubr.bf16.gmra.mrb[0].mxu0 %v95
  %v327 = vpop.f32.mrb[0].mxu0
  %v328 = vadd.f32 %v76, %v327
  %v329 = vpop.f32.mrb[0].mxu0
  %v330 = vpop.f32.mrb[0].mxu0
  %v331 = vpop.f32.mrb[0].mxu0
  %332 = vdwg.mxu0
  %v336 = vcombine.low %v287, %v289
  %v338 = vunpack.c.l.s4 1983009808
  %v339 = vunpack.c.0.s8 %v338
  %v340 = vlaneseq
  %v341 = vshrl.u32 %v340, 7
  %v342 = vsub.s32 %v339, %v341
  %v343 = vrot.slane %v336, %v342
  %v345 = vunpack.c.l.s4 1983009808
  %v346 = vunpack.c.0.s8 %v345
  %v347 = vlaneseq
  %v348 = vshrl.u32 %v347, 7
  %v349 = vsub.s32 %v346, %v348
  %v350 = vrot.slane %v328, %v349
  %v351 = vcombine.low %v343, %v350
  %353 = vst [vmem:[%s6] sm:$0x3f] %v351
  %v354 = vld [vmem:[%s3] sm:$0x1]
  %v355 = vld [vmem:[%s4] sm:$0xff]
  %v356 = vld [vmem:[%s4 + $0x8] sm:$0xf]
  %v357 = vld [vmem:[%s4 + $0xc] sm:$0xff]
  %v358 = vld [vmem:[%s4 + $0x14] sm:$0xf]
  %v359 = vld [vmem:[%s4 + $0x18] sm:$0xff]
  %v360 = vld [vmem:[%s4 + $0x20] sm:$0xf]
  %v361 = vld [vmem:[%s4 + $0x24] sm:$0xff]
  %v362 = vld [vmem:[%s4 + $0x2c] sm:$0xf]
  %v363 = vld [vmem:[%s4 + $0x30] sm:$0xff]
  %v364 = vld [vmem:[%s4 + $0x38] sm:$0xf]
  %v365 = vld [vmem:[%s4 + $0x3c] sm:$0xff]
  %v366 = vld [vmem:[%s4 + $0x44] sm:$0xf]
  %v367 = vld [vmem:[%s4 + $0x48] sm:$0xff]
  %v368 = vld [vmem:[%s4 + $0x50] sm:$0xf]
  %v369 = vld [vmem:[%s4 + $0x54] sm:$0xff]
  %v370 = vld [vmem:[%s4 + $0x5c] sm:$0xf]
  %v371 = vld [vmem:[%s4 + $0x60] sm:$0xff]
  %v372 = vld [vmem:[%s4 + $0x68] sm:$0xf]
  %v373 = vld [vmem:[%s4 + $0x6c] sm:$0xff]
  %v374 = vld [vmem:[%s4 + $0x74] sm:$0xf]
  %v375 = vld [vmem:[%s5] sm:$0x7]
  %v377 = vlaneseq
  %v378 = vshrl.u32 %v377, 7
  %v379 = vsub.s32 0, %v378
  %v380 = vrot.slane %v375, %v379
  %v381 = vlaneseq
  %v382 = vshrl.u32 %v381, 7
  %v383 = vsub.s32 1, %v382
  %v384 = vrot.slane %v375, %v383
  %v385 = vlaneseq
  %v386 = vshrl.u32 %v385, 7
  %v387 = vsub.s32 2, %v386
  %v388 = vrot.slane %v375, %v387
  %v412 = vunpack.c.l.b16 %v355
  %v413 = vunpack.c.h.b16 %v355
  %v414 = vunpack.c.l.b16 %v356
  %v415 = vunpack.c.l.b16 %v357
  %v416 = vunpack.c.h.b16 %v357
  %v417 = vunpack.c.l.b16 %v358
  %v418 = vunpack.c.l.b16 %v359
  %v419 = vunpack.c.h.b16 %v359
  %v420 = vunpack.c.l.b16 %v360
  %v421 = vunpack.c.l.b16 %v361
  %v422 = vunpack.c.h.b16 %v361
  %v423 = vunpack.c.l.b16 %v362
  %v424 = vunpack.c.l.b16 %v363
  %v425 = vunpack.c.h.b16 %v363
  %v426 = vunpack.c.l.b16 %v364
  %v427 = vunpack.c.l.b16 %v365
  %v428 = vunpack.c.h.b16 %v365
  %v429 = vunpack.c.l.b16 %v366
  %v430 = vunpack.c.l.b16 %v367
  %v431 = vunpack.c.h.b16 %v367
  %v432 = vunpack.c.l.b16 %v368
  %v433 = vunpack.c.l.b16 %v369
  %v434 = vunpack.c.h.b16 %v369
  %v435 = vunpack.c.l.b16 %v370
  %v436 = vunpack.c.l.b16 %v371
  %v437 = vunpack.c.h.b16 %v371
  %v438 = vunpack.c.l.b16 %v372
  %v439 = vunpack.c.l.b16 %v373
  %v440 = vunpack.c.h.b16 %v373
  %v441 = vunpack.c.l.b16 %v374
  %v442 = vpack.c.b16 %v415, %v412
  %v443 = vpack.c.b16 %v416, %v413
  %v444 = vpack.c.b16 %v417, %v414
  %v445 = vpack.c.b16 %v421, %v418
  %v446 = vpack.c.b16 %v422, %v419
  %v447 = vpack.c.b16 %v423, %v420
  %v448 = vpack.c.b16 %v427, %v424
  %v449 = vpack.c.b16 %v428, %v425
  %v450 = vpack.c.b16 %v429, %v426
  %v451 = vpack.c.b16 %v433, %v430
  %v452 = vpack.c.b16 %v434, %v431
  %v453 = vpack.c.b16 %v435, %v432
  %v454 = vpack.c.b16 %v439, %v436
  %v455 = vpack.c.b16 %v440, %v437
  %v456 = vpack.c.b16 %v441, %v438
  %vm472 = vcmask 654336
  %v474 = vsel %vm472, %v354, 0
  %476 = vmatprep.subr.bf16.mxu0 %v443
  %477 = vmatpush1.bf16.msra.mxu0 %v442
  %478 = vmatprep.subr.bf16.mxu0 %v446
  %479 = vmatpush1.bf16.msra.mxu0 %v445
  %480 = vmatprep.subr.bf16.mxu0 %v449
  %481 = vmatpush1.bf16.msra.mxu0 %v448
  %482 = vmatprep.subr.bf16.mxu0 %v452
  %483 = vmatpush1.bf16.msra.mxu0 %v451
  %484 = vmatprep.subr.bf16.mxu0 %v455
  %485 = vmatpush1.bf16.msra.mxu0 %v454
  %486 = vmatprep.subr.bf16.mxu0 0
  %487 = vmatpush1.bf16.msra.mxu0 0
  %488 = vmatprep.subr.bf16.mxu0 0
  %489 = vmatpush1.bf16.msra.mxu0 0
  %490 = vmatprep.subr.bf16.mxu0 0
  %491 = vmatpush1.bf16.msra.mxu0 0
  %492 = vmatprep.subr.bf16.mxu0 0
  %493 = vmatpush1.bf16.msra.mxu0 0
  %494 = vmatprep.subr.bf16.mxu0 0
  %495 = vmatpush1.bf16.msra.mxu0 0
  %496 = vmatprep.subr.bf16.mxu0 0
  %497 = vmatpush1.bf16.msra.mxu0 0
  %498 = vmatprep.subr.bf16.mxu0 0
  %499 = vmatpush1.bf16.msra.mxu0 0
  %500 = vmatprep.subr.bf16.mxu0 0
  %501 = vmatpush1.bf16.msra.mxu0 0
  %502 = vmatprep.subr.bf16.mxu0 0
  %503 = vmatpush1.bf16.msra.mxu0 0
  %504 = vmatprep.subr.bf16.mxu0 0
  %505 = vmatpush1.bf16.msra.mxu0 0
  %506 = vmatprep.subr.bf16.mxu0 0
  %507 = vmatpush1.bf16.msra.mxu0 0
  %508 = vmatprep.mubr.bf16.mxu0 0
  %509 = vmatmul.mubr.bf16.gmra.mrb[0].mxu0 %v474
  %v510 = vpop.f32.mrb[0].mxu0
  %v511 = vadd.f32 %v380, %v510
  %v512 = vpop.f32.mrb[0].mxu0
  %v513 = vadd.f32 %v384, %v512
  %v514 = vpop.f32.mrb[0].mxu0
  %v515 = vpop.f32.mrb[0].mxu0
  %516 = vdwg.mxu0
  %517 = vmatprep.subr.bf16.mxu0 0
  %518 = vmatpush1.bf16.msra.mxu0 %v444
  %519 = vmatprep.subr.bf16.mxu0 0
  %520 = vmatpush1.bf16.msra.mxu0 %v447
  %521 = vmatprep.subr.bf16.mxu0 0
  %522 = vmatpush1.bf16.msra.mxu0 %v450
  %523 = vmatprep.subr.bf16.mxu0 0
  %524 = vmatpush1.bf16.msra.mxu0 %v453
  %525 = vmatprep.subr.bf16.mxu0 0
  %526 = vmatpush1.bf16.msra.mxu0 %v456
  %527 = vmatprep.subr.bf16.mxu0 0
  %528 = vmatpush1.bf16.msra.mxu0 0
  %529 = vmatprep.subr.bf16.mxu0 0
  %530 = vmatpush1.bf16.msra.mxu0 0
  %531 = vmatprep.subr.bf16.mxu0 0
  %532 = vmatpush1.bf16.msra.mxu0 0
  %533 = vmatprep.subr.bf16.mxu0 0
  %534 = vmatpush1.bf16.msra.mxu0 0
  %535 = vmatprep.subr.bf16.mxu0 0
  %536 = vmatpush1.bf16.msra.mxu0 0
  %537 = vmatprep.subr.bf16.mxu0 0
  %538 = vmatpush1.bf16.msra.mxu0 0
  %539 = vmatprep.subr.bf16.mxu0 0
  %540 = vmatpush1.bf16.msra.mxu0 0
  %541 = vmatprep.subr.bf16.mxu0 0
  %542 = vmatpush1.bf16.msra.mxu0 0
  %543 = vmatprep.subr.bf16.mxu0 0
  %544 = vmatpush1.bf16.msra.mxu0 0
  %545 = vmatprep.subr.bf16.mxu0 0
  %546 = vmatpush1.bf16.msra.mxu0 0
  %547 = vmatprep.subr.bf16.mxu0 0
  %548 = vmatpush1.bf16.msra.mxu0 0
  %549 = vmatprep.mubr.bf16.mxu0 0
  %550 = vmatmul.mubr.bf16.gmra.mrb[0].mxu0 %v474
  %v551 = vpop.f32.mrb[0].mxu0
  %v552 = vadd.f32 %v388, %v551
  %v553 = vpop.f32.mrb[0].mxu0
  %v554 = vpop.f32.mrb[0].mxu0
  %v555 = vpop.f32.mrb[0].mxu0
  %556 = vdwg.mxu0
  %v557 = vmul.f32 %v511, 0.003921569
  %v558 = vmul.f32 %v513, 0.003921569
  %v559 = vmul.f32 %v552, 0.003921569
  %v563 = vcombine.low %v557, %v558
  %v565 = vunpack.c.l.s4 1983009808
  %v566 = vunpack.c.0.s8 %v565
  %v567 = vlaneseq
  %v568 = vshrl.u32 %v567, 7
  %v569 = vsub.s32 %v566, %v568
  %v570 = vrot.slane %v563, %v569
  %v572 = vunpack.c.l.s4 1983009808
  %v573 = vunpack.c.0.s8 %v572
  %v574 = vlaneseq
  %v575 = vshrl.u32 %v574, 7
  %v576 = vsub.s32 %v573, %v575
  %v577 = vrot.slane %v559, %v576
  %v578 = vcombine.low %v570, %v577
  %580 = vst [vmem:[%s7] sm:$0x3f] %v578
  // Predicated region
  $region26: #{forward.3} parent=0 // pred_check
    _
  $region27: #{forward.3} parent=0 // pred_check_branch
    %582 = sbr.rel (0) target = $region29
  $region28: #{forward.3} parent=0 // pred_region
    _
  $region29: #{forward.3} parent=0 // pred_fallthru
    _
  // Predicated region
  $region30: #{forward.3} parent=0 // pred_check
    _
  $region31: #{forward.3} parent=0 // pred_check_branch
    %584 = sbr.rel (0) target = $region33
  $region32: #{forward.3} parent=0 // pred_region
    _
  $region33: #{forward.3} parent=0 // pred_fallthru
    _
  // Predicated region
  $region34: #{forward.3} parent=0 // pred_check
    _
  $region35: #{forward.3} parent=0 // pred_check_branch
    %586 = sbr.rel (0) target = $region37
  $region36: #{forward.3} parent=0 // pred_region
    _
  $region37: #{forward.3} parent=0 // pred_fallthru
    _
  // Predicated region
  $region38: #{forward.3} parent=0 // pred_check
    _
  $region39: #{forward.3} parent=0 // pred_check_branch
    %588 = sbr.rel (0) target = $region41
  $region40: #{forward.3} parent=0 // pred_region
    _
  $region41: #{forward.3} parent=0 // pred_fallthru
    _

// kernel: forward.5
$region0: #{forward.5}
  #allocation0 [shape = 'u32[]', space=smem, size = 0x4, offset = 0x4, fixed_abs, tag = 'smem constant byte address 0x4 - core index']
  #allocation1 [shape = 'u32[144,128]{1,0:T(1,128)}', space=vmem, size = 0x12000, scoped, tag = 'internal scratch']
  %s0 = inlined_call_operand.vmem [shape: f32[2,3,128], index: 0, kind: input, shape index: {}]
  %s1 = inlined_call_operand.vmem [shape: f32[2,3,128], index: 1, kind: input, shape index: {}]
  %s2 = inlined_call_operand.vmem [shape: f32[2,27], index: 2, kind: input, shape index: {}]
  %s3 = inlined_call_operand.vmem [shape: f32[2,3,128], index: 3, kind: output, shape index: {}]
  %s4 = sld [smem:[#allocation0]]
  $region49: #{forward.5} parent=0
    _
  %s6 = ssub.s32 1, %s4
  %s7 = scalar_select 0, %s6, %s4
  $region1: #{forward.5} parent=0
    #allocation2 [shape = 'u8[1024]{0}', space=smem, size = 0x400, scoped, tag = 'input window, operand 2, single buffered']
    #allocation3 [shape = 's32[2]{0}', space=sflag, size = 0x8, scoped, tag = 'scoped memory for forward.5']
    %8 = vsyncpa [#allocation3], 0
    loop: start=0, step=1, limit=4
    $region2: #{forward.5} parent=1 // loop_pre_header
      _
    $region3: #{forward.5} parent=1 // loop_header
      %s10 = sphi 0, %s14
      %p11 = scmp.ge.s32.totalorder %s10, 4
      %s17 = sphi 0, %s29
      %s18 = sphi 0, %s25
      %s19 = sphi 0, %s17
      %s20 = sphi 0, %s18
      %s21 = sphi 0, %s19
      %s22 = sphi 0, %s20
      %s34 = sphi 0, %s36
      %s37 = sphi 0, %s34
      %s38 = sphi 0, %s37
      %s54 = sphi 0, %s38
      %s62 = sphi 0, %s64
      %s65 = sphi 0, %s62
      %s66 = sphi 0, %s65
      %s82 = sphi 0, %s66
      %s86 = sphi 0, %s86
      %s88 = sphi 0, %s86
      %s89 = sphi 0, %s88
      %s103 = sphi 0, %s89
      %s111 = sphi 0, %s113
      %s114 = sphi 0, %s111
      %s115 = sphi 0, %s114
      %s131 = sphi 0, %s115
    $region4: #{forward.5} parent=1 // loop_header_branch
      %13 = sbr.rel (%p11) target = $region8
    $region5: #{forward.5} parent=1 // loop_body
      %s15 = ssub.s32 %s10, 1
      %s16 = ssub.s32 %s10, 2
      %s23 = sadd.s32 1, %s18
      %p24 = scmp.ge.s32.totalorder %s23, 1
      %s25 = scalar_select %p24, 0, %s23
      %s26 = sadd.s32 1, %s17
      %s27 = scalar_select %p24, %s26, %s17
      %p28 = scmp.ge.s32.totalorder %s27, 2
      %s29 = scalar_select %p28, 0, %s27
      %s30 = ssub.s32 %s17, %s29
      %s31 = ssub.s32 %s18, %s25
      %s32 = sor.u32 %s30, %s31
      %p33 = scmp.eq.s32.totalorder %s32, 0
      %s35 = sadd.s32 %s34, 1
      %s36 = scalar_select %p33, %s34, %s35
      %p39 = pneg %p33
      %p40 = scmp.eq.s32.totalorder %s10, 1
      %p41 = por %p39, %p40
      %p42 = scmp.ne.s32.totalorder %s34, %s37
      %p43 = scmp.eq.s32.totalorder %s10, 0
      %p44 = por %p42, %p43
      %p45 = scmp.ne.s32.totalorder %s34, %s37
      %p46 = scmp.eq.s32.totalorder %s15, 1
      %p47 = por %p45, %p46
      %p48 = scmp.ne.s32.totalorder %s37, %s38
      %p49 = scmp.eq.s32.totalorder %s15, 0
      %p50 = por %p48, %p49
      %p51 = scmp.ne.s32.totalorder %s37, %s38
      %p52 = scmp.eq.s32.totalorder %s16, 1
      %p53 = por %p51, %p52
      %p55 = scmp.ne.s32.totalorder %s38, %s54
      %p56 = scmp.eq.s32.totalorder %s16, 0
      %p57 = por %p55, %p56
      %s58 = ssub.s32 %s17, %s29
      %s59 = ssub.s32 %s18, %s25
      %s60 = sor.u32 %s58, %s59
      %p61 = scmp.eq.s32.totalorder %s60, 0
      %s63 = sadd.s32 %s62, 1
      %s64 = scalar_select %p61, %s62, %s63
      %p67 = pneg %p61
      %p68 = scmp.eq.s32.totalorder %s10, 1
      %p69 = por %p67, %p68
      %p70 = scmp.ne.s32.totalorder %s62, %s65
      %p71 = scmp.eq.s32.totalorder %s10, 0
      %p72 = por %p70, %p71
      %p73 = scmp.ne.s32.totalorder %s62, %s65
      %p74 = scmp.eq.s32.totalorder %s15, 1
      %p75 = por %p73, %p74
      %p76 = scmp.ne.s32.totalorder %s65, %s66
      %p77 = scmp.eq.s32.totalorder %s15, 0
      %p78 = por %p76, %p77
      %p79 = scmp.ne.s32.totalorder %s65, %s66
      %p80 = scmp.eq.s32.totalorder %s16, 1
      %p81 = por %p79, %p80
      %p83 = scmp.ne.s32.totalorder %s66, %s82
      %p84 = scmp.eq.s32.totalorder %s16, 0
      %p85 = por %p83, %p84
      %s87 = sadd.s32 %s86, 1
      %p90 = scmp.eq.s32.totalorder %s10, 1
      %p91 = scmp.ne.s32.totalorder %s86, %s88
      %p92 = scmp.eq.s32.totalorder %s10, 0
      %p93 = por %p91, %p92
      %p94 = scmp.ne.s32.totalorder %s86, %s88
      %p95 = scmp.eq.s32.totalorder %s15, 1
      %p96 = por %p94, %p95
      %p97 = scmp.ne.s32.totalorder %s88, %s89
      %p98 = scmp.eq.s32.totalorder %s15, 0
      %p99 = por %p97, %p98
      %p100 = scmp.ne.s32.totalorder %s88, %s89
      %p101 = scmp.eq.s32.totalorder %s16, 1
      %p102 = por %p100, %p101
      %p104 = scmp.ne.s32.totalorder %s89, %s103
      %p105 = scmp.eq.s32.totalorder %s16, 0
      %p106 = por %p104, %p105
      %s107 = ssub.s32 %s17, %s29
      %s108 = ssub.s32 %s18, %s25
      %s109 = sor.u32 %s107, %s108
      %p110 = scmp.eq.s32.totalorder %s109, 0
      %s112 = sadd.s32 %s111, 1
      %s113 = scalar_select %p110, %s111, %s112
      %p116 = pneg %p110
      %p117 = scmp.eq.s32.totalorder %s10, 1
      %p118 = por %p116, %p117
      %p119 = scmp.ne.s32.totalorder %s111, %s114
      %p120 = scmp.eq.s32.totalorder %s10, 0
      %p121 = por %p119, %p120
      %p122 = scmp.ne.s32.totalorder %s111, %s114
      %p123 = scmp.eq.s32.totalorder %s15, 1
      %p124 = por %p122, %p123
      %p125 = scmp.ne.s32.totalorder %s114, %s115
      %p126 = scmp.eq.s32.totalorder %s15, 0
      %p127 = por %p125, %p126
      %p128 = scmp.ne.s32.totalorder %s114, %s115
      %p129 = scmp.eq.s32.totalorder %s16, 1
      %p130 = por %p128, %p129
      %p132 = scmp.ne.s32.totalorder %s115, %s131
      %p133 = scmp.eq.s32.totalorder %s16, 0
      %p134 = por %p132, %p133
      %p135 = scmp.le.s32.totalorder 1, %s10
      %p136 = scmp.lt.s32.totalorder %s10, 3
      %p137 = pnand %p135, %p136
      %p138 = pneg %p137
      // Predicated region
      $region9: #{forward.5} parent=5 // pred_check
        _
      $region10: #{forward.5} parent=5 // pred_check_branch
        %140 = sbr.rel (%p137) target = $region12
      $region11: #{forward.5} parent=5 // pred_region
        %s141 = ssub.s32 %s10, 1
        // Predicated region
        $region13: #{forward.5} parent=11 // pred_check
          %p142 = pneg %p99
        $region14: #{forward.5} parent=11 // pred_check_branch
          %144 = sbr.rel (%p142) target = $region16
        $region15: #{forward.5} parent=11 // pred_region
          %s146 = ssub.s32 32, 32
          %147 = vsyncadd [#allocation3], %s146
          %s149 = sshll.u32 %s2, 4
          %s150 = int_to_ptr.vmem [resolvable:$true] %s149
          %152 = dma.vmem_to_smem %s150, 32, [#allocation2], [#allocation3]
        $region16: #{forward.5} parent=11 // pred_fallthru
          _
      $region12: #{forward.5} parent=5 // pred_fallthru
        _
      %p153 = scmp.lt.s32.totalorder %s10, 2
      // Predicated region
      $region17: #{forward.5} parent=5 // pred_check
        %p154 = pneg %p153
      $region18: #{forward.5} parent=5 // pred_check_branch
        %156 = sbr.rel (%p154) target = $region20
      $region19: #{forward.5} parent=5 // pred_region
        // Predicated region
        $region21: #{forward.5} parent=19 // pred_check
          %p157 = pneg %p44
        $region22: #{forward.5} parent=19 // pred_check_branch
          %159 = sbr.rel (%p157) target = $region24
        $region23: #{forward.5} parent=19 // pred_region
          %p160 = scmp.lt.s32.totalorder %s17, 1
          %s161 = scalar_select %p160, %s17, 1
          %p162 = scmp.lt.s32.totalorder %s18, 0
          %s163 = scalar_select %p162, %s18, 0
          %s164 = sadd.s32 %s163, %s161
          %s165 = smul.addr %s164, 4
          %s166 = scalar_lea.vmem %s0, %s165
        $region24: #{forward.5} parent=19 // pred_fallthru
          _
        // Predicated region
        $region25: #{forward.5} parent=19 // pred_check
          %p167 = pneg %p72
        $region26: #{forward.5} parent=19 // pred_check_branch
          %169 = sbr.rel (%p167) target = $region28
        $region27: #{forward.5} parent=19 // pred_region
          %p170 = scmp.lt.s32.totalorder %s17, 1
          %s171 = scalar_select %p170, %s17, 1
          %p172 = scmp.lt.s32.totalorder %s18, 0
          %s173 = scalar_select %p172, %s18, 0
          %s174 = sadd.s32 %s173, %s171
          %s175 = smul.addr %s174, 4
          %s176 = scalar_lea.vmem %s1, %s175
        $region28: #{forward.5} parent=19 // pred_fallthru
          _
      $region20: #{forward.5} parent=5 // pred_fallthru
        _
      %p177 = scmp.le.s32.totalorder 1, %s10
      %p178 = scmp.lt.s32.totalorder %s10, 3
      %p179 = pnand %p177, %p178
      %p180 = pneg %p179
      // Predicated region
      $region29: #{forward.5} parent=5 // pred_check
        _
      $region30: #{forward.5} parent=5 // pred_check_branch
        %182 = sbr.rel (%p179) target = $region32
      $region31: #{forward.5} parent=5 // pred_region
        %s183 = ssub.s32 %s10, 1
        // Predicated region
        $region33: #{forward.5} parent=31 // pred_check
          %p184 = pneg %p99
        $region34: #{forward.5} parent=31 // pred_check_branch
          %186 = sbr.rel (%p184) target = $region36
        $region35: #{forward.5} parent=31 // pred_region
          %187 = dma.done [#allocation3], 32
        $region36: #{forward.5} parent=31 // pred_fallthru
          _
        %188 = sfence
        %p189 = scmp.lt.s32.totalorder %s19, 1
        %s190 = scalar_select %p189, %s19, 1
        %p191 = scmp.lt.s32.totalorder %s20, 0
        %s192 = scalar_select %p191, %s20, 0
        %s193 = sadd.s32 %s192, %s190
        %s194 = smul.addr %s193, 4
        %s195 = scalar_lea.vmem %s0, %s194
        %p196 = pneg %p50
        %p197 = pneg %p47
        %p198 = scmp.lt.s32.totalorder %s19, 1
        %s199 = scalar_select %p198, %s19, 1
        %p200 = scmp.lt.s32.totalorder %s20, 0
        %s201 = scalar_select %p200, %s20, 0
        %s202 = sadd.s32 %s201, %s199
        %s203 = smul.addr %s202, 4
        %s204 = scalar_lea.vmem %s1, %s203
        %p205 = pneg %p78
        %p206 = pneg %p75
        %p207 = pneg %p99
        %p208 = pneg %p96
        %p209 = pneg %p127
        %p210 = pneg %p124
        %p211 = scmp.lt.s32.totalorder %s19, 1
        %s212 = scalar_select %p211, %s19, 1
        %p213 = scmp.lt.s32.totalorder %s20, 0
        %s214 = scalar_select %p213, %s20, 0
        %s215 = sadd.s32 %s214, %s212
        %s216 = smul.addr %s215, 4
        %s217 = scalar_lea.vmem %s3, %s216
        %p218 = scmp.lt.s32.totalorder %s19, 1
        %s219 = scalar_select %p218, %s19, 1
        %p220 = scmp.lt.s32.totalorder %s20, 0
        %s221 = scalar_select %p220, %s20, 0
        %s222 = sadd.s32 %s221, %s219
        %s223 = smul.addr %s222, 4
        %s224 = scalar_lea.vmem %s0, %s223
        %p225 = scmp.lt.s32.totalorder %s19, 1
        %s226 = scalar_select %p225, %s19, 1
        %p227 = scmp.lt.s32.totalorder %s20, 0
        %s228 = scalar_select %p227, %s20, 0
        %s229 = sadd.s32 %s228, %s226
        %s230 = smul.addr %s229, 4
        %s231 = scalar_lea.vmem %s1, %s230
        %p232 = scmp.lt.s32.totalorder %s19, 1
        %s233 = scalar_select %p232, %s19, 1
        %p234 = scmp.lt.s32.totalorder %s20, 0
        %s235 = scalar_select %p234, %s20, 0
        %s236 = sadd.s32 %s235, %s233
        %s237 = smul.addr %s236, 4
        %s238 = scalar_lea.vmem %s3, %s237
        %v239 = vld [vmem:[%s231] sm:$0x7]
        %v240 = vmul.f32 %v239, %v239
        %v242 = vrot.slane %v240, 1
        %v244 = vadd.f32 %v240, %v242
        %v245 = vrot.slane %v240, 2
        %v247 = vadd.f32 %v244, %v245
        %v248 = vmax.f32 %v247, 1e-24
        %v249 = vrsqrt.pop %v248
        %v250 = vmul.f32 %v239, %v249
        %v252 = vrot.slane %v249, 7
        %v254 = vmul.f32 %v239, %v252
        %v255 = vrot.slane %v249, 6
        %v257 = vmul.f32 %v239, %v255
        %v258 = vmul.f32 %v254, -1.7724539
        %v259 = vmul.f32 %v257, 1.7724539
        %v260 = vmul.f32 %v250, -1.7724539
        %v261 = vmul.f32 %v250, 2.4270325
        %v263 = vrot.slane %v254, 1
        %v265 = vmul.f32 %v261, %v263
        %v266 = vmul.f32 %v254, -2.4270325
        %v268 = vrot.slane %v257, 1
        %v270 = vmul.f32 %v266, %v268
        %v271 = vmul.f32 %v257, 3.0
        %v272 = vmul.f32 %v271, %v257
        %v273 = vsub.f32 %v272, 1.0
        %v274 = vmul.f32 %v273, 0.7006239
        %v275 = vmul.f32 %v250, -2.4270325
        %v276 = vrot.slane %v257, 2
        %v278 = vmul.f32 %v275, %v276
        %v279 = vmul.f32 %v250, %v250
        %v280 = vmul.f32 %v254, %v254
        %v282 = vrot.slane %v280, 1
        %v284 = vsub.f32 %v279, %v282
        %v285 = vmul.f32 %v284, 1.2135162
        %v286 = vld [vmem:[%s224] sm:$0x7]
        %s287 = smul.u32 %s19, 128
        %s288 = sld [smem:[#allocation2 + %s287]]
        %s289 = sadd.s32 %s287, 3
        %s290 = sld [smem:[#allocation2 + %s289]]
        %s291 = sadd.s32 %s287, 6
        %s292 = sld [smem:[#allocation2 + %s291]]
        %s293 = sadd.s32 %s287, 9
        %s294 = sld [smem:[#allocation2 + %s293]]
        %s295 = sadd.s32 %s287, 12
        %s296 = sld [smem:[#allocation2 + %s295]]
        %s297 = sadd.s32 %s287, 15
        %s298 = sld [smem:[#allocation2 + %s297]]
        %s299 = sadd.s32 %s287, 18
        %s300 = sld [smem:[#allocation2 + %s299]]
        %s301 = sadd.s32 %s287, 21
        %s302 = sld [smem:[#allocation2 + %s301]]
        %s303 = sadd.s32 %s287, 24
        %s304 = sld [smem:[#allocation2 + %s303]]
        %s305 = smul.f32 %s288, 0.88622695
        %v306 = vstv %s290
        %v307 = vmul.f32 %v258, %v306
        %v308 = vstv %s305
        %v309 = vadd.f32 %v308, %v307
        %v310 = vstv %s292
        %v311 = vmul.f32 %v259, %v310
        %v313 = vrot.slane %v311, 1
        %v315 = vadd.f32 %v309, %v313
        %v316 = vstv %s294
        %v317 = vmul.f32 %v260, %v316
        %v319 = vrot.slane %v317, 7
        %v321 = vadd.f32 %v315, %v319
        %v322 = vstv %s296
        %v323 = vmul.f32 %v265, %v322
        %v325 = vrot.slane %v323, 7
        %v327 = vadd.f32 %v321, %v325
        %v328 = vstv %s298
        %v329 = vmul.f32 %v270, %v328
        %v330 = vadd.f32 %v327, %v329
        %v331 = vstv %s300
        %v332 = vmul.f32 %v274, %v331
        %v334 = vrot.slane %v332, 1
        %v336 = vadd.f32 %v330, %v334
        %v337 = vstv %s302
        %v338 = vmul.f32 %v278, %v337
        %v340 = vrot.slane %v338, 7
        %v342 = vadd.f32 %v336, %v340
        %v343 = vstv %s304
        %v344 = vmul.f32 %v285, %v343
        %v346 = vrot.slane %v344, 7
        %v348 = vadd.f32 %v342, %v346
        %v350 = vrot.slane %v286, 7
        %v352 = vmul.f32 %v348, %v350
        %353 = vst [vmem:[%s238 - $0x1] sm:$0x2] %v352
        %s354 = sadd.s32 %s287, 1
        %s355 = sld [smem:[#allocation2 + %s354]]
        %s356 = sadd.s32 %s287, 4
        %s357 = sld [smem:[#allocation2 + %s356]]
        %s358 = sadd.s32 %s287, 7
        %s359 = sld [smem:[#allocation2 + %s358]]
        %s360 = sadd.s32 %s287, 10
        %s361 = sld [smem:[#allocation2 + %s360]]
        %s362 = sadd.s32 %s287, 13
        %s363 = sld [smem:[#allocation2 + %s362]]
        %s364 = sadd.s32 %s287, 16
        %s365 = sld [smem:[#allocation2 + %s364]]
        %s366 = sadd.s32 %s287, 19
        %s367 = sld [smem:[#allocation2 + %s366]]
        %s368 = sadd.s32 %s287, 22
        %s369 = sld [smem:[#allocation2 + %s368]]
        %s370 = sadd.s32 %s287, 25
        %s371 = sld [smem:[#allocation2 + %s370]]
        %s372 = smul.f32 %s355, 0.88622695
        %v373 = vstv %s357
        %v374 = vmul.f32 %v258, %v373
        %v375 = vstv %s372
        %v376 = vadd.f32 %v375, %v374
        %v377 = vstv %s359
        %v378 = vmul.f32 %v259, %v377
        %v380 = vrot.slane %v378, 1
        %v382 = vadd.f32 %v376, %v380
        %v383 = vstv %s361
        %v384 = vmul.f32 %v260, %v383
        %v386 = vrot.slane %v384, 7
        %v388 = vadd.f32 %v382, %v386
        %v389 = vstv %s363
        %v390 = vmul.f32 %v265, %v389
        %v392 = vrot.slane %v390, 7
        %v394 = vadd.f32 %v388, %v392
        %v395 = vstv %s365
        %v396 = vmul.f32 %v270, %v395
        %v397 = vadd.f32 %v394, %v396
        %v398 = vstv %s367
        %v399 = vmul.f32 %v274, %v398
        %v401 = vrot.slane %v399, 1
        %v403 = vadd.f32 %v397, %v401
        %v404 = vstv %s369
        %v405 = vmul.f32 %v278, %v404
        %v407 = vrot.slane %v405, 7
        %v409 = vadd.f32 %v403, %v407
        %v410 = vstv %s371
        %v411 = vmul.f32 %v285, %v410
        %v413 = vrot.slane %v411, 7
        %v415 = vadd.f32 %v409, %v413
        %v416 = vmul.f32 %v415, %v286
        %417 = vst [vmem:[%s238] sm:$0x2] %v416
        %s418 = sadd.s32 %s287, 2
        %s419 = sld [smem:[#allocation2 + %s418]]
        %s420 = sadd.s32 %s287, 5
        %s421 = sld [smem:[#allocation2 + %s420]]
        %s422 = sadd.s32 %s287, 8
        %s423 = sld [smem:[#allocation2 + %s422]]
        %s424 = sadd.s32 %s287, 11
        %s425 = sld [smem:[#allocation2 + %s424]]
        %s426 = sadd.s32 %s287, 14
        %s427 = sld [smem:[#allocation2 + %s426]]
        %s428 = sadd.s32 %s287, 17
        %s429 = sld [smem:[#allocation2 + %s428]]
        %s430 = sadd.s32 %s287, 20
        %s431 = sld [smem:[#allocation2 + %s430]]
        %s432 = sadd.s32 %s287, 23
        %s433 = sld [smem:[#allocation2 + %s432]]
        %s434 = sadd.s32 %s287, 26
        %s435 = sld [smem:[#allocation2 + %s434]]
        %s436 = smul.f32 %s419, 0.88622695
        %v437 = vstv %s421
        %v438 = vmul.f32 %v258, %v437
        %v439 = vstv %s436
        %v440 = vadd.f32 %v439, %v438
        %v441 = vstv %s423
        %v442 = vmul.f32 %v259, %v441
        %v444 = vrot.slane %v442, 1
        %v446 = vadd.f32 %v440, %v444
        %v447 = vstv %s425
        %v448 = vmul.f32 %v260, %v447
        %v450 = vrot.slane %v448, 7
        %v452 = vadd.f32 %v446, %v450
        %v453 = vstv %s427
        %v454 = vmul.f32 %v265, %v453
        %v456 = vrot.slane %v454, 7
        %v458 = vadd.f32 %v452, %v456
        %v459 = vstv %s429
        %v460 = vmul.f32 %v270, %v459
        %v461 = vadd.f32 %v458, %v460
        %v462 = vstv %s431
        %v463 = vmul.f32 %v274, %v462
        %v465 = vrot.slane %v463, 1
        %v467 = vadd.f32 %v461, %v465
        %v468 = vstv %s433
        %v469 = vmul.f32 %v278, %v468
        %v471 = vrot.slane %v469, 7
        %v473 = vadd.f32 %v467, %v471
        %v474 = vstv %s435
        %v475 = vmul.f32 %v285, %v474
        %v477 = vrot.slane %v475, 7
        %v479 = vadd.f32 %v473, %v477
        %v480 = vrot.slane %v286, 1
        %v482 = vmul.f32 %v479, %v480
        %483 = vst [vmem:[%s238 + $0x1] sm:$0x2] %v482
        %p484 = scmp.lt.s32.totalorder %s19, 1
        %s485 = scalar_select %p484, %s19, 1
        %p486 = scmp.lt.s32.totalorder %s20, 0
        %s487 = scalar_select %p486, %s20, 0
        %s488 = sadd.s32 %s487, %s485
        %s489 = smul.addr %s488, 4
        %s490 = scalar_lea.vmem %s3, %s489
        // Predicated region
        $region37: #{forward.5} parent=31 // pred_check
          %p491 = pneg %p124
        $region38: #{forward.5} parent=31 // pred_check_branch
          %493 = sbr.rel (%p491) target = $region40
        $region39: #{forward.5} parent=31 // pred_region
          _
        $region40: #{forward.5} parent=31 // pred_fallthru
          _
      $region32: #{forward.5} parent=5 // pred_fallthru
        _
      %p494 = scmp.le.s32.totalorder 2, %s10
      // Predicated region
      $region41: #{forward.5} parent=5 // pred_check
        %p495 = pneg %p494
      $region42: #{forward.5} parent=5 // pred_check_branch
        %497 = sbr.rel (%p495) target = $region44
      $region43: #{forward.5} parent=5 // pred_region
        %s498 = ssub.s32 %s10, 2
        // Predicated region
        $region45: #{forward.5} parent=43 // pred_check
          %p499 = pneg %p130
        $region46: #{forward.5} parent=43 // pred_check_branch
          %501 = sbr.rel (%p499) target = $region48
        $region47: #{forward.5} parent=43 // pred_region
          %p502 = scmp.lt.s32.totalorder %s21, 1
          %s503 = scalar_select %p502, %s21, 1
          %p504 = scmp.lt.s32.totalorder %s22, 0
          %s505 = scalar_select %p504, %s22, 0
          %s506 = sadd.s32 %s505, %s503
          %s507 = smul.addr %s506, 4
          %s508 = scalar_lea.vmem %s3, %s507
        $region48: #{forward.5} parent=43 // pred_fallthru
          _
      $region44: #{forward.5} parent=5 // pred_fallthru
        _
    $region6: #{forward.5} parent=1 // loop_footer
      %s14 = sadd.s32 1, %s10
    $region7: #{forward.5} parent=1 // loop_footer_branch
      %9 = sbr.rel target = $region3
    $region8: #{forward.5} parent=1 // loop_exit
      _
    %509 = vsyncpa [#allocation3], 1
    %s510 = scalar_lea.sflag [#allocation3], 1
    %511 = vsyncpa %s510, 1

</llo_original>
